<compile_context>
chip_gen: v7x
topology: tpu7x:2x2x1
jax: 0.10.0
libtpu: 0.0.40
codegen_flags: <defaults>
</compile_context>

<pallas_src>
import math

import jax
import jax.numpy as jnp
from jax.experimental import pallas as pl
from jax.experimental.pallas import tpu as pltpu


SIZES_TAIL = [500, 100, 50, 1]   # hidden / output widths of CIFAR10_FC
LANE = 128                       # TPU lane width
MAX_BATCH_TILE = 1024            # VMEM-safe cap (v7x, F=3072, f32 x double-buffer)
TILE_GRAN = 256                  # multiple of 256 (v6e/v7x MXU) => also 128 (v5e)


def _round_up(n, m):
    return ((n + m - 1) // m) * m


def _pick_batch_tile(B):
    """MXU-aligned batch tile: as large as the VMEM budget allows, but with
    >= 2 grid steps when the batch permits so v7x's two TensorCores both get
    work on the "parallel" batch axis."""
    if B <= TILE_GRAN:
        return TILE_GRAN
    half = _round_up((B + 1) // 2, TILE_GRAN)    # ensures >= 2 grid steps
    return min(half, MAX_BATCH_TILE)


def cifar10_fc_kernel(x_ref,
                      w1_ref, b1_ref,
                      w2_ref, b2_ref,
                      w3_ref, b3_ref,
                      w4_ref, b4_ref,
                      o_ref):
    """Fused 4-layer MLP forward for one batch tile.

    x tile arrives batch-major (TB, F); everything downstream is feature-major
    (features, batch) so the batch lives on the 128-lane axis.  Matmul operands
    are bf16, accumulation is f32 (preferred_element_type)."""
    xb = x_ref[...].astype(jnp.bfloat16)                               # (TB, F)

    # Layer 1: contract the feature axis of both operands (no x transpose):
    #   (512, F) . (TB, F) -> (512, TB)
    h = jax.lax.dot_general(
        w1_ref[...], xb,
        dimension_numbers=(((1,), (1,)), ((), ())),
        preferred_element_type=jnp.float32) + b1_ref[...]
    h = jnp.maximum(h, 0.0).astype(jnp.bfloat16)

    # Layer 2: (128, 512) @ (512, TB) -> (128, TB)
    h = jnp.dot(w2_ref[...], h, preferred_element_type=jnp.float32) + b2_ref[...]
    h = jnp.maximum(h, 0.0).astype(jnp.bfloat16)

    # Layer 3: (128, 128) @ (128, TB) -> (128, TB)
    h = jnp.dot(w3_ref[...], h, preferred_element_type=jnp.float32) + b3_ref[...]
    h = jnp.maximum(h, 0.0).astype(jnp.bfloat16)

    # Layer 4: (8, 128) @ (128, TB) -> (8, TB); only row 0 is real (1 -> 8 pad).
    z = jnp.dot(w4_ref[...], h, preferred_element_type=jnp.float32) + b4_ref[...]
    z = z[0:1, :]                                                      # (1, TB)
    # Sigmoid: exp (EUP) + approx reciprocal (EUP) -> lane-dense (1, TB) store.
    o_ref[...] = pl.reciprocal(1.0 + jnp.exp(-z), approx=True).astype(o_ref.dtype)


def init_params(key, inputsize):
    """Xavier-uniform weights in PyTorch layout (out, in), zero biases (f32)."""
    sizes = [inputsize] + SIZES_TAIL
    params = []
    for i in range(len(sizes) - 1):
        fan_in, fan_out = sizes[i], sizes[i + 1]
        key, sub = jax.random.split(key)
        a = math.sqrt(3.0) * math.sqrt(2.0 / (fan_in + fan_out))
        w = jax.random.uniform(sub, (fan_out, fan_in), jnp.float32, -a, a)
        b = jnp.zeros((fan_out,), jnp.float32)
        params.append((w, b))
    return params


def pack_params(params):
    """Pad hidden/output dims to lane/sublane multiples and cast weights to
    bf16.  Call ONCE and reuse across forward calls (hoisted per review).
    The input-feature dim of layer 0 is left unpadded: the x BlockSpec uses
    the full array dim, and the MXU handles the unaligned K internally."""
    n = len(params)
    packed = []
    for i, (w, b) in enumerate(params):
        out_f, in_f = w.shape
        in_p = in_f if i == 0 else _round_up(in_f, LANE)
        out_p = 8 if i == n - 1 else _round_up(out_f, LANE)
        wp = (jnp.zeros((out_p, in_p), jnp.float32)
              .at[:out_f, :in_f].set(w)
              .astype(jnp.bfloat16))                   # bf16 MXU operand
        bp = jnp.zeros((out_p, 1), jnp.float32).at[:out_f, 0].set(b)  # f32 bias
        packed += [wp, bp]
    return packed


def cifar10_fc_forward(x, packed):
    """x: (B, inputsize) float32.  packed: flat [w1,b1,...,w4,b4] from pack_params."""
    B, F = x.shape
    TB = _pick_batch_tile(B)
    Bp = _round_up(B, TB)
    if Bp != B:
        # Batch-only zero pad (no transpose, no feature pad); skipped entirely
        # when B is already a multiple of the tile.
        # TODO(synk): a masked/ragged last tile would avoid even this copy.
        x = jnp.pad(x, ((0, Bp - B), (0, 0)))

    # x tile is pipelined over the batch; weights/biases use constant
    # index_maps -> DMA'd into VMEM once and kept resident across grid steps.
    resident = lambda i: (0, 0)
    in_specs = [pl.BlockSpec((TB, F), lambda i: (i, 0))]
    for li in range(4):
        w, b = packed[2 * li], packed[2 * li + 1]
        in_specs.append(pl.BlockSpec(w.shape, resident))
        in_specs.append(pl.BlockSpec(b.shape, resident))

    out = pl.pallas_call(
        cifar10_fc_kernel,
        out_shape=jax.ShapeDtypeStruct((1, Bp), jnp.float32),
        grid=(Bp // TB,),
        in_specs=in_specs,
        out_specs=pl.BlockSpec((1, TB), lambda i: (0, i)),
        compiler_params=pltpu.CompilerParams(
            dimension_semantics=("parallel",),
            vmem_limit_bytes=48 * 1024 * 1024),
    )(x, *packed)

    # (1, Bp) lane-dense result -> logical (B, 1)
    return out[0, :B].reshape(B, 1)


def reference_forward(x, params):
    """Plain-JAX f32 reference mirroring the PyTorch forward."""
    h = x
    n = len(params)
    for i, (w, b) in enumerate(params):
        h = h @ w.T + b
        if i < n - 1:
            h = jnp.maximum(h, 0.0)
    return 1.0 / (1.0 + jnp.exp(-h))


if __name__ == "__main__":
    key = jax.random.PRNGKey(0)
    k_x, k_p = jax.random.split(key)

    batch = 8
    inputsize = 64  # small arbitrary feature-vector input

    x = jax.random.normal(k_x, (batch, inputsize), jnp.float32)
    params = init_params(k_p, inputsize)
    packed = pack_params(params)          # pad + bf16 cast exactly once

    out = cifar10_fc_forward(x, packed)
    out = jax.block_until_ready(out)

    ref = reference_forward(x, params)
    assert out.shape == (batch, 1)
    # bf16 operands + approx reciprocal -> loosened tolerance vs f32 reference.
    assert jnp.allclose(out, ref, atol=2e-2, rtol=2e-2), "mismatch vs reference"

    print("KERNEL_OK")
</pallas_src>

<mosaic_0001>
module attributes {stable_mosaic.version = 11 : i64} {
  func.func @cifar10_fc_kernel(%arg0: i32, %arg1: memref<256x64xf32, #tpu.memory_space<vmem>>, %arg2: memref<512x64xbf16, #tpu.memory_space<vmem>>, %arg3: memref<512x1xf32, #tpu.memory_space<vmem>>, %arg4: memref<128x512xbf16, #tpu.memory_space<vmem>>, %arg5: memref<128x1xf32, #tpu.memory_space<vmem>>, %arg6: memref<128x128xbf16, #tpu.memory_space<vmem>>, %arg7: memref<128x1xf32, #tpu.memory_space<vmem>>, %arg8: memref<8x128xbf16, #tpu.memory_space<vmem>>, %arg9: memref<8x1xf32, #tpu.memory_space<vmem>>, %arg10: memref<1x256xf32, #tpu.memory_space<vmem>>) attributes {dimension_semantics = [#tpu.dimension_semantics<parallel>], iteration_bounds = array<i64: 1>, scalar_prefetch = 0 : i64, scratch_operands = 0 : i64, tpu.core_type = #tpu.core_type<tc>, window_params = [{transform_indices = @transform_0, window_bounds = array<i64: 256, 64>}, {pipeline_mode = #tpu.pipeline_mode<synchronous>, transform_indices = @transform_1, window_bounds = array<i64: 512, 64>}, {pipeline_mode = #tpu.pipeline_mode<synchronous>, transform_indices = @transform_2, window_bounds = array<i64: 512, 1>}, {pipeline_mode = #tpu.pipeline_mode<synchronous>, transform_indices = @transform_3, window_bounds = array<i64: 128, 512>}, {pipeline_mode = #tpu.pipeline_mode<synchronous>, transform_indices = @transform_4, window_bounds = array<i64: 128, 1>}, {pipeline_mode = #tpu.pipeline_mode<synchronous>, transform_indices = @transform_5, window_bounds = array<i64: 128, 128>}, {pipeline_mode = #tpu.pipeline_mode<synchronous>, transform_indices = @transform_6, window_bounds = array<i64: 128, 1>}, {pipeline_mode = #tpu.pipeline_mode<synchronous>, transform_indices = @transform_7, window_bounds = array<i64: 8, 128>}, {pipeline_mode = #tpu.pipeline_mode<synchronous>, transform_indices = @transform_8, window_bounds = array<i64: 8, 1>}, {transform_indices = @transform_9, window_bounds = array<i64: 1, 256>}]} {
    %c0 = arith.constant 0 : index
    %c0_0 = arith.constant 0 : index
    %0 = vector.load %arg1[%c0, %c0_0] : memref<256x64xf32, #tpu.memory_space<vmem>>, vector<256x64xf32>
    %1 = arith.truncf %0 : vector<256x64xf32> to vector<256x64xbf16>
    %c0_1 = arith.constant 0 : index
    %c0_2 = arith.constant 0 : index
    %2 = vector.load %arg2[%c0_1, %c0_2] : memref<512x64xbf16, #tpu.memory_space<vmem>>, vector<512x64xbf16>
    %cst = arith.constant dense<0.000000e+00> : vector<512x256xf32>
    %3 = tpu.matmul %2, %1, %cst {dimension_numbers = #tpu.dot_dimension_numbers<[1], [1], [0], [0], [0, 0, 1, 0], [], []>} : vector<512x64xbf16>, vector<256x64xbf16>, vector<512x256xf32> -> vector<512x256xf32>
    %c0_3 = arith.constant 0 : index
    %c0_4 = arith.constant 0 : index
    %4 = vector.load %arg3[%c0_3, %c0_4] : memref<512x1xf32, #tpu.memory_space<vmem>>, vector<512x1xf32>
    %5 = vector.broadcast %4 : vector<512x1xf32> to vector<512x256xf32>
    %6 = arith.addf %3, %5 : vector<512x256xf32>
    %cst_5 = arith.constant 0.000000e+00 : f32
    %7 = vector.broadcast %cst_5 : f32 to vector<512x256xf32>
    %8 = arith.maximumf %6, %7 : vector<512x256xf32>
    %9 = arith.truncf %8 : vector<512x256xf32> to vector<512x256xbf16>
    %c0_6 = arith.constant 0 : index
    %c0_7 = arith.constant 0 : index
    %10 = vector.load %arg4[%c0_6, %c0_7] : memref<128x512xbf16, #tpu.memory_space<vmem>>, vector<128x512xbf16>
    %cst_8 = arith.constant dense<0.000000e+00> : vector<128x256xf32>
    %11 = tpu.matmul %10, %9, %cst_8 {dimension_numbers = #tpu.dot_dimension_numbers<[1], [0], [0], [1], [0, 0, 1, 1], [], []>} : vector<128x512xbf16>, vector<512x256xbf16>, vector<128x256xf32> -> vector<128x256xf32>
    %c0_9 = arith.constant 0 : index
    %c0_10 = arith.constant 0 : index
    %12 = vector.load %arg5[%c0_9, %c0_10] : memref<128x1xf32, #tpu.memory_space<vmem>>, vector<128x1xf32>
    %13 = vector.broadcast %12 : vector<128x1xf32> to vector<128x256xf32>
    %14 = arith.addf %11, %13 : vector<128x256xf32>
    %cst_11 = arith.constant 0.000000e+00 : f32
    %15 = vector.broadcast %cst_11 : f32 to vector<128x256xf32>
    %16 = arith.maximumf %14, %15 : vector<128x256xf32>
    %17 = arith.truncf %16 : vector<128x256xf32> to vector<128x256xbf16>
    %c0_12 = arith.constant 0 : index
    %c0_13 = arith.constant 0 : index
    %18 = vector.load %arg6[%c0_12, %c0_13] : memref<128x128xbf16, #tpu.memory_space<vmem>>, vector<128x128xbf16>
    %cst_14 = arith.constant dense<0.000000e+00> : vector<128x256xf32>
    %19 = tpu.matmul %18, %17, %cst_14 {dimension_numbers = #tpu.dot_dimension_numbers<[1], [0], [0], [1], [0, 0, 1, 1], [], []>} : vector<128x128xbf16>, vector<128x256xbf16>, vector<128x256xf32> -> vector<128x256xf32>
    %c0_15 = arith.constant 0 : index
    %c0_16 = arith.constant 0 : index
    %20 = vector.load %arg7[%c0_15, %c0_16] : memref<128x1xf32, #tpu.memory_space<vmem>>, vector<128x1xf32>
    %21 = vector.broadcast %20 : vector<128x1xf32> to vector<128x256xf32>
    %22 = arith.addf %19, %21 : vector<128x256xf32>
    %cst_17 = arith.constant 0.000000e+00 : f32
    %23 = vector.broadcast %cst_17 : f32 to vector<128x256xf32>
    %24 = arith.maximumf %22, %23 : vector<128x256xf32>
    %25 = arith.truncf %24 : vector<128x256xf32> to vector<128x256xbf16>
    %c0_18 = arith.constant 0 : index
    %c0_19 = arith.constant 0 : index
    %26 = vector.load %arg8[%c0_18, %c0_19] : memref<8x128xbf16, #tpu.memory_space<vmem>>, vector<8x128xbf16>
    %cst_20 = arith.constant dense<0.000000e+00> : vector<8x256xf32>
    %27 = tpu.matmul %26, %25, %cst_20 {dimension_numbers = #tpu.dot_dimension_numbers<[1], [0], [0], [1], [0, 0, 1, 1], [], []>} : vector<8x128xbf16>, vector<128x256xbf16>, vector<8x256xf32> -> vector<8x256xf32>
    %c0_21 = arith.constant 0 : index
    %c0_22 = arith.constant 0 : index
    %28 = vector.load %arg9[%c0_21, %c0_22] : memref<8x1xf32, #tpu.memory_space<vmem>>, vector<8x1xf32>
    %29 = vector.broadcast %28 : vector<8x1xf32> to vector<8x256xf32>
    %30 = arith.addf %27, %29 : vector<8x256xf32>
    %31 = vector.extract_strided_slice %30 {offsets = [0, 0], sizes = [1, 256], strides = [1, 1]} : vector<8x256xf32> to vector<1x256xf32>
    %cst_23 = arith.constant 0.000000e+00 : f32
    %32 = vector.broadcast %cst_23 : f32 to vector<1x256xf32>
    %33 = arith.subf %32, %31 : vector<1x256xf32>
    %34 = math.exp %33 : vector<1x256xf32>
    %cst_24 = arith.constant 1.000000e+00 : f32
    %35 = vector.broadcast %cst_24 : f32 to vector<1x256xf32>
    %36 = arith.addf %35, %34 : vector<1x256xf32>
    %37 = tpu.reciprocal %36 {approx = true} : vector<1x256xf32> -> vector<1x256xf32>
    %c0_25 = arith.constant 0 : index
    %c0_26 = arith.constant 0 : index
    %38 = vector.load %arg10[%c0_25, %c0_26] : memref<1x256xf32, #tpu.memory_space<vmem>>, vector<1x256xf32>
    tpu.vector_store %arg10[%c0_25, %c0_26], %37 {strides = array<i32>} : memref<1x256xf32, #tpu.memory_space<vmem>>, vector<1x256xf32>,
    return
  }
  func.func @transform_0(%arg0: i32) -> (i32, i32) {
    %c0_i32 = arith.constant 0 : i32
    %c0_i32_0 = arith.constant 0 : i32
    return %arg0, %c0_i32 : i32, i32
  }
  func.func @transform_1(%arg0: i32) -> (i32, i32) {
    %c0_i32 = arith.constant 0 : i32
    %c0_i32_0 = arith.constant 0 : i32
    %c0_i32_1 = arith.constant 0 : i32
    return %c0_i32, %c0_i32_0 : i32, i32
  }
  func.func @transform_2(%arg0: i32) -> (i32, i32) {
    %c0_i32 = arith.constant 0 : i32
    %c0_i32_0 = arith.constant 0 : i32
    %c0_i32_1 = arith.constant 0 : i32
    return %c0_i32, %c0_i32_0 : i32, i32
  }
  func.func @transform_3(%arg0: i32) -> (i32, i32) {
    %c0_i32 = arith.constant 0 : i32
    %c0_i32_0 = arith.constant 0 : i32
    %c0_i32_1 = arith.constant 0 : i32
    return %c0_i32, %c0_i32_0 : i32, i32
  }
  func.func @transform_4(%arg0: i32) -> (i32, i32) {
    %c0_i32 = arith.constant 0 : i32
    %c0_i32_0 = arith.constant 0 : i32
    %c0_i32_1 = arith.constant 0 : i32
    return %c0_i32, %c0_i32_0 : i32, i32
  }
  func.func @transform_5(%arg0: i32) -> (i32, i32) {
    %c0_i32 = arith.constant 0 : i32
    %c0_i32_0 = arith.constant 0 : i32
    %c0_i32_1 = arith.constant 0 : i32
    return %c0_i32, %c0_i32_0 : i32, i32
  }
  func.func @transform_6(%arg0: i32) -> (i32, i32) {
    %c0_i32 = arith.constant 0 : i32
    %c0_i32_0 = arith.constant 0 : i32
    %c0_i32_1 = arith.constant 0 : i32
    return %c0_i32, %c0_i32_0 : i32, i32
  }
  func.func @transform_7(%arg0: i32) -> (i32, i32) {
    %c0_i32 = arith.constant 0 : i32
    %c0_i32_0 = arith.constant 0 : i32
    %c0_i32_1 = arith.constant 0 : i32
    return %c0_i32, %c0_i32_0 : i32, i32
  }
  func.func @transform_8(%arg0: i32) -> (i32, i32) {
    %c0_i32 = arith.constant 0 : i32
    %c0_i32_0 = arith.constant 0 : i32
    %c0_i32_1 = arith.constant 0 : i32
    return %c0_i32, %c0_i32_0 : i32, i32
  }
  func.func @transform_9(%arg0: i32) -> (i32, i32) {
    %c0_i32 = arith.constant 0 : i32
    %c0_i32_0 = arith.constant 0 : i32
    return %c0_i32, %arg0 : i32, i32
  }
}

</mosaic_0001>

<llo_original>
// kernel: tpu_custom_call.1
$region0: #{tpu_custom_call.1}
  #allocation0 [shape = 'u32[]', space=smem, size = 0x4, offset = 0x4, fixed_abs, tag = 'smem constant byte address 0x4 - core index']
  #allocation1 [shape = 'u32[144,128]{1,0:T(1,128)}', space=vmem, size = 0x12000, scoped, tag = 'internal scratch']
  %s0 = inlined_call_operand.vmem [shape: f32[256,64], index: 0, kind: input, shape index: {}]
  %s1 = inlined_call_operand.vmem [shape: bf16[512,64], index: 1, kind: input, shape index: {}]
  %s2 = inlined_call_operand.vmem [shape: f32[512,1], index: 2, kind: input, shape index: {}]
  %s3 = inlined_call_operand.vmem [shape: bf16[128,512], index: 3, kind: input, shape index: {}]
  %s4 = inlined_call_operand.vmem [shape: f32[128,1], index: 4, kind: input, shape index: {}]
  %s5 = inlined_call_operand.vmem [shape: bf16[128,128], index: 5, kind: input, shape index: {}]
  %s6 = inlined_call_operand.vmem [shape: f32[128,1], index: 6, kind: input, shape index: {}]
  %s7 = inlined_call_operand.vmem [shape: bf16[8,128], index: 7, kind: input, shape index: {}]
  %s8 = inlined_call_operand.vmem [shape: f32[8,1], index: 8, kind: input, shape index: {}]
  %s9 = inlined_call_operand.hbm [shape: f32[1,256], index: 9, kind: output, shape index: {}]
  %s10 = sld [smem:[#allocation0]]
  $region46: #{tpu_custom_call.1} parent=0
    _
  %s12 = ssub.s32 1, %s10
  %s13 = scalar_select 0, %s12, %s10
  $region1: #{tpu_custom_call.1} parent=0
    #allocation2 [shape = 'u8[1024]{0}', space=vmem, size = 0x400, scoped, tag = 'output window, operand 0, single buffered']
    #allocation3 [shape = 's32[1]{0}', space=sflag, size = 0x4, scoped, tag = 'scoped memory for tpu_custom_call.1']
    %14 = vsyncpa [#allocation3], 0
    // Predicated region
    $region2: #{tpu_custom_call.1} parent=1 // pred_check
      _
    $region3: #{tpu_custom_call.1} parent=1 // pred_check_branch
      %16 = sbr.rel (0) target = $region5
    $region4: #{tpu_custom_call.1} parent=1 // pred_region
      _
    $region5: #{tpu_custom_call.1} parent=1 // pred_fallthru
      _
    // Predicated region
    $region6: #{tpu_custom_call.1} parent=1 // pred_check
      _
    $region7: #{tpu_custom_call.1} parent=1 // pred_check_branch
      %18 = sbr.rel (0) target = $region9
    $region8: #{tpu_custom_call.1} parent=1 // pred_region
      _
    $region9: #{tpu_custom_call.1} parent=1 // pred_fallthru
      _
    // Predicated region
    $region10: #{tpu_custom_call.1} parent=1 // pred_check
      _
    $region11: #{tpu_custom_call.1} parent=1 // pred_check_branch
      %20 = sbr.rel (0) target = $region13
    $region12: #{tpu_custom_call.1} parent=1 // pred_region
      _
    $region13: #{tpu_custom_call.1} parent=1 // pred_fallthru
      _
    // Predicated region
    $region14: #{tpu_custom_call.1} parent=1 // pred_check
      _
    $region15: #{tpu_custom_call.1} parent=1 // pred_check_branch
      %22 = sbr.rel (0) target = $region17
    $region16: #{tpu_custom_call.1} parent=1 // pred_region
      _
    $region17: #{tpu_custom_call.1} parent=1 // pred_fallthru
      _
    // Predicated region
    $region18: #{tpu_custom_call.1} parent=1 // pred_check
      _
    $region19: #{tpu_custom_call.1} parent=1 // pred_check_branch
      %24 = sbr.rel (0) target = $region21
    $region20: #{tpu_custom_call.1} parent=1 // pred_region
      _
    $region21: #{tpu_custom_call.1} parent=1 // pred_fallthru
      _
    // Predicated region
    $region22: #{tpu_custom_call.1} parent=1 // pred_check
      _
    $region23: #{tpu_custom_call.1} parent=1 // pred_check_branch
      %26 = sbr.rel (0) target = $region25
    $region24: #{tpu_custom_call.1} parent=1 // pred_region
      _
    $region25: #{tpu_custom_call.1} parent=1 // pred_fallthru
      _
    // Predicated region
    $region26: #{tpu_custom_call.1} parent=1 // pred_check
      _
    $region27: #{tpu_custom_call.1} parent=1 // pred_check_branch
      %28 = sbr.rel (0) target = $region29
    $region28: #{tpu_custom_call.1} parent=1 // pred_region
      _
    $region29: #{tpu_custom_call.1} parent=1 // pred_fallthru
      _
    // Predicated region
    $region30: #{tpu_custom_call.1} parent=1 // pred_check
      _
    $region31: #{tpu_custom_call.1} parent=1 // pred_check_branch
      %30 = sbr.rel (0) target = $region33
    $region32: #{tpu_custom_call.1} parent=1 // pred_region
      _
    $region33: #{tpu_custom_call.1} parent=1 // pred_fallthru
      _
    // Predicated region
    $region34: #{tpu_custom_call.1} parent=1 // pred_check
      _
    $region35: #{tpu_custom_call.1} parent=1 // pred_check_branch
      %32 = sbr.rel (0) target = $region37
    $region36: #{tpu_custom_call.1} parent=1 // pred_region
      _
    $region37: #{tpu_custom_call.1} parent=1 // pred_fallthru
      _
    %v34 = vld [vmem:[%s0] sm:$0xff]
    %v35 = vld [vmem:[%s0 + $0x8] sm:$0xff]
    %v36 = vld [vmem:[%s0 + $0x10] sm:$0xff]
    %v37 = vld [vmem:[%s0 + $0x18] sm:$0xff]
    %v38 = vld [vmem:[%s0 + $0x20] sm:$0xff]
    %v39 = vld [vmem:[%s0 + $0x28] sm:$0xff]
    %v40 = vld [vmem:[%s0 + $0x30] sm:$0xff]
    %v41 = vld [vmem:[%s0 + $0x38] sm:$0xff]
    %v42 = vld [vmem:[%s0 + $0x40] sm:$0xff]
    %v43 = vld [vmem:[%s0 + $0x48] sm:$0xff]
    %v44 = vld [vmem:[%s0 + $0x50] sm:$0xff]
    %v45 = vld [vmem:[%s0 + $0x58] sm:$0xff]
    %v46 = vld [vmem:[%s0 + $0x60] sm:$0xff]
    %v47 = vld [vmem:[%s0 + $0x68] sm:$0xff]
    %v48 = vld [vmem:[%s0 + $0x70] sm:$0xff]
    %v49 = vld [vmem:[%s0 + $0x78] sm:$0xff]
    %v50 = vld [vmem:[%s0 + $0x80] sm:$0xff]
    %v51 = vld [vmem:[%s0 + $0x88] sm:$0xff]
    %v52 = vld [vmem:[%s0 + $0x90] sm:$0xff]
    %v53 = vld [vmem:[%s0 + $0x98] sm:$0xff]
    %v54 = vld [vmem:[%s0 + $0xa0] sm:$0xff]
    %v55 = vld [vmem:[%s0 + $0xa8] sm:$0xff]
    %v56 = vld [vmem:[%s0 + $0xb0] sm:$0xff]
    %v57 = vld [vmem:[%s0 + $0xb8] sm:$0xff]
    %v58 = vld [vmem:[%s0 + $0xc0] sm:$0xff]
    %v59 = vld [vmem:[%s0 + $0xc8] sm:$0xff]
    %v60 = vld [vmem:[%s0 + $0xd0] sm:$0xff]
    %v61 = vld [vmem:[%s0 + $0xd8] sm:$0xff]
    %v62 = vld [vmem:[%s0 + $0xe0] sm:$0xff]
    %v63 = vld [vmem:[%s0 + $0xe8] sm:$0xff]
    %v64 = vld [vmem:[%s0 + $0xf0] sm:$0xff]
    %v65 = vld [vmem:[%s0 + $0xf8] sm:$0xff]
    %v66 = vpack.c.bf16 %v35, %v34
    %v67 = vpack.c.bf16 %v37, %v36
    %v68 = vpack.c.bf16 %v39, %v38
    %v69 = vpack.c.bf16 %v41, %v40
    %v70 = vpack.c.bf16 %v43, %v42
    %v71 = vpack.c.bf16 %v45, %v44
    %v72 = vpack.c.bf16 %v47, %v46
    %v73 = vpack.c.bf16 %v49, %v48
    %v74 = vpack.c.bf16 %v51, %v50
    %v75 = vpack.c.bf16 %v53, %v52
    %v76 = vpack.c.bf16 %v55, %v54
    %v77 = vpack.c.bf16 %v57, %v56
    %v78 = vpack.c.bf16 %v59, %v58
    %v79 = vpack.c.bf16 %v61, %v60
    %v80 = vpack.c.bf16 %v63, %v62
    %v81 = vpack.c.bf16 %v65, %v64
    %v82 = vld [vmem:[%s1] sm:$0xf]
    %v83 = vld [vmem:[%s1 + $0x4] sm:$0xf]
    %v84 = vld [vmem:[%s1 + $0x8] sm:$0xf]
    %v85 = vld [vmem:[%s1 + $0xc] sm:$0xf]
    %v86 = vld [vmem:[%s1 + $0x10] sm:$0xf]
    %v87 = vld [vmem:[%s1 + $0x14] sm:$0xf]
    %v88 = vld [vmem:[%s1 + $0x18] sm:$0xf]
    %v89 = vld [vmem:[%s1 + $0x1c] sm:$0xf]
    %v90 = vld [vmem:[%s1 + $0x20] sm:$0xf]
    %v91 = vld [vmem:[%s1 + $0x24] sm:$0xf]
    %v92 = vld [vmem:[%s1 + $0x28] sm:$0xf]
    %v93 = vld [vmem:[%s1 + $0x2c] sm:$0xf]
    %v94 = vld [vmem:[%s1 + $0x30] sm:$0xf]
    %v95 = vld [vmem:[%s1 + $0x34] sm:$0xf]
    %v96 = vld [vmem:[%s1 + $0x38] sm:$0xf]
    %v97 = vld [vmem:[%s1 + $0x3c] sm:$0xf]
    %v98 = vld [vmem:[%s1 + $0x40] sm:$0xf]
    %v99 = vld [vmem:[%s1 + $0x44] sm:$0xf]
    %v100 = vld [vmem:[%s1 + $0x48] sm:$0xf]
    %v101 = vld [vmem:[%s1 + $0x4c] sm:$0xf]
    %v102 = vld [vmem:[%s1 + $0x50] sm:$0xf]
    %v103 = vld [vmem:[%s1 + $0x54] sm:$0xf]
    %v104 = vld [vmem:[%s1 + $0x58] sm:$0xf]
    %v105 = vld [vmem:[%s1 + $0x5c] sm:$0xf]
    %v106 = vld [vmem:[%s1 + $0x60] sm:$0xf]
    %v107 = vld [vmem:[%s1 + $0x64] sm:$0xf]
    %v108 = vld [vmem:[%s1 + $0x68] sm:$0xf]
    %v109 = vld [vmem:[%s1 + $0x6c] sm:$0xf]
    %v110 = vld [vmem:[%s1 + $0x70] sm:$0xf]
    %v111 = vld [vmem:[%s1 + $0x74] sm:$0xf]
    %v112 = vld [vmem:[%s1 + $0x78] sm:$0xf]
    %v113 = vld [vmem:[%s1 + $0x7c] sm:$0xf]
    %v114 = vld [vmem:[%s1 + $0x80] sm:$0xf]
    %v115 = vld [vmem:[%s1 + $0x84] sm:$0xf]
    %v116 = vld [vmem:[%s1 + $0x88] sm:$0xf]
    %v117 = vld [vmem:[%s1 + $0x8c] sm:$0xf]
    %v118 = vld [vmem:[%s1 + $0x90] sm:$0xf]
    %v119 = vld [vmem:[%s1 + $0x94] sm:$0xf]
    %v120 = vld [vmem:[%s1 + $0x98] sm:$0xf]
    %v121 = vld [vmem:[%s1 + $0x9c] sm:$0xf]
    %v122 = vld [vmem:[%s1 + $0xa0] sm:$0xf]
    %v123 = vld [vmem:[%s1 + $0xa4] sm:$0xf]
    %v124 = vld [vmem:[%s1 + $0xa8] sm:$0xf]
    %v125 = vld [vmem:[%s1 + $0xac] sm:$0xf]
    %v126 = vld [vmem:[%s1 + $0xb0] sm:$0xf]
    %v127 = vld [vmem:[%s1 + $0xb4] sm:$0xf]
    %v128 = vld [vmem:[%s1 + $0xb8] sm:$0xf]
    %v129 = vld [vmem:[%s1 + $0xbc] sm:$0xf]
    %v130 = vld [vmem:[%s1 + $0xc0] sm:$0xf]
    %v131 = vld [vmem:[%s1 + $0xc4] sm:$0xf]
    %v132 = vld [vmem:[%s1 + $0xc8] sm:$0xf]
    %v133 = vld [vmem:[%s1 + $0xcc] sm:$0xf]
    %v134 = vld [vmem:[%s1 + $0xd0] sm:$0xf]
    %v135 = vld [vmem:[%s1 + $0xd4] sm:$0xf]
    %v136 = vld [vmem:[%s1 + $0xd8] sm:$0xf]
    %v137 = vld [vmem:[%s1 + $0xdc] sm:$0xf]
    %v138 = vld [vmem:[%s1 + $0xe0] sm:$0xf]
    %v139 = vld [vmem:[%s1 + $0xe4] sm:$0xf]
    %v140 = vld [vmem:[%s1 + $0xe8] sm:$0xf]
    %v141 = vld [vmem:[%s1 + $0xec] sm:$0xf]
    %v142 = vld [vmem:[%s1 + $0xf0] sm:$0xf]
    %v143 = vld [vmem:[%s1 + $0xf4] sm:$0xf]
    %v144 = vld [vmem:[%s1 + $0xf8] sm:$0xf]
    %v145 = vld [vmem:[%s1 + $0xfc] sm:$0xf]
    %v146 = vld [vmem:[%s2] sm:$0xff]
    %v147 = vld [vmem:[%s2 + $0x8] sm:$0xff]
    %v148 = vld [vmem:[%s2 + $0x10] sm:$0xff]
    %v149 = vld [vmem:[%s2 + $0x18] sm:$0xff]
    %v150 = vld [vmem:[%s2 + $0x20] sm:$0xff]
    %v151 = vld [vmem:[%s2 + $0x28] sm:$0xff]
    %v152 = vld [vmem:[%s2 + $0x30] sm:$0xff]
    %v153 = vld [vmem:[%s2 + $0x38] sm:$0xff]
    %v154 = vld [vmem:[%s2 + $0x40] sm:$0xff]
    %v155 = vld [vmem:[%s2 + $0x48] sm:$0xff]
    %v156 = vld [vmem:[%s2 + $0x50] sm:$0xff]
    %v157 = vld [vmem:[%s2 + $0x58] sm:$0xff]
    %v158 = vld [vmem:[%s2 + $0x60] sm:$0xff]
    %v159 = vld [vmem:[%s2 + $0x68] sm:$0xff]
    %v160 = vld [vmem:[%s2 + $0x70] sm:$0xff]
    %v161 = vld [vmem:[%s2 + $0x78] sm:$0xff]
    %v162 = vld [vmem:[%s2 + $0x80] sm:$0xff]
    %v163 = vld [vmem:[%s2 + $0x88] sm:$0xff]
    %v164 = vld [vmem:[%s2 + $0x90] sm:$0xff]
    %v165 = vld [vmem:[%s2 + $0x98] sm:$0xff]
    %v166 = vld [vmem:[%s2 + $0xa0] sm:$0xff]
    %v167 = vld [vmem:[%s2 + $0xa8] sm:$0xff]
    %v168 = vld [vmem:[%s2 + $0xb0] sm:$0xff]
    %v169 = vld [vmem:[%s2 + $0xb8] sm:$0xff]
    %v170 = vld [vmem:[%s2 + $0xc0] sm:$0xff]
    %v171 = vld [vmem:[%s2 + $0xc8] sm:$0xff]
    %v172 = vld [vmem:[%s2 + $0xd0] sm:$0xff]
    %v173 = vld [vmem:[%s2 + $0xd8] sm:$0xff]
    %v174 = vld [vmem:[%s2 + $0xe0] sm:$0xff]
    %v175 = vld [vmem:[%s2 + $0xe8] sm:$0xff]
    %v176 = vld [vmem:[%s2 + $0xf0] sm:$0xff]
    %v177 = vld [vmem:[%s2 + $0xf8] sm:$0xff]
    %v178 = vld [vmem:[%s2 + $0x100] sm:$0xff]
    %v179 = vld [vmem:[%s2 + $0x108] sm:$0xff]
    %v180 = vld [vmem:[%s2 + $0x110] sm:$0xff]
    %v181 = vld [vmem:[%s2 + $0x118] sm:$0xff]
    %v182 = vld [vmem:[%s2 + $0x120] sm:$0xff]
    %v183 = vld [vmem:[%s2 + $0x128] sm:$0xff]
    %v184 = vld [vmem:[%s2 + $0x130] sm:$0xff]
    %v185 = vld [vmem:[%s2 + $0x138] sm:$0xff]
    %v186 = vld [vmem:[%s2 + $0x140] sm:$0xff]
    %v187 = vld [vmem:[%s2 + $0x148] sm:$0xff]
    %v188 = vld [vmem:[%s2 + $0x150] sm:$0xff]
    %v189 = vld [vmem:[%s2 + $0x158] sm:$0xff]
    %v190 = vld [vmem:[%s2 + $0x160] sm:$0xff]
    %v191 = vld [vmem:[%s2 + $0x168] sm:$0xff]
    %v192 = vld [vmem:[%s2 + $0x170] sm:$0xff]
    %v193 = vld [vmem:[%s2 + $0x178] sm:$0xff]
    %v194 = vld [vmem:[%s2 + $0x180] sm:$0xff]
    %v195 = vld [vmem:[%s2 + $0x188] sm:$0xff]
    %v196 = vld [vmem:[%s2 + $0x190] sm:$0xff]
    %v197 = vld [vmem:[%s2 + $0x198] sm:$0xff]
    %v198 = vld [vmem:[%s2 + $0x1a0] sm:$0xff]
    %v199 = vld [vmem:[%s2 + $0x1a8] sm:$0xff]
    %v200 = vld [vmem:[%s2 + $0x1b0] sm:$0xff]
    %v201 = vld [vmem:[%s2 + $0x1b8] sm:$0xff]
    %v202 = vld [vmem:[%s2 + $0x1c0] sm:$0xff]
    %v203 = vld [vmem:[%s2 + $0x1c8] sm:$0xff]
    %v204 = vld [vmem:[%s2 + $0x1d0] sm:$0xff]
    %v205 = vld [vmem:[%s2 + $0x1d8] sm:$0xff]
    %v206 = vld [vmem:[%s2 + $0x1e0] sm:$0xff]
    %v207 = vld [vmem:[%s2 + $0x1e8] sm:$0xff]
    %v208 = vld [vmem:[%s2 + $0x1f0] sm:$0xff]
    %v209 = vld [vmem:[%s2 + $0x1f8] sm:$0xff]
    %211 = vset.pattern.permute.xlu0 0
    %212 = vperm.xlu0 %211, %v146
    %v213 = vpop.permute.xlu0 %212
    %216 = vset.pattern.permute.xlu0 0
    %217 = vperm.xlu0 %216, %v147
    %v218 = vpop.permute.xlu0 %217
    %221 = vset.pattern.permute.xlu0 0
    %222 = vperm.xlu0 %221, %v148
    %v223 = vpop.permute.xlu0 %222
    %226 = vset.pattern.permute.xlu0 0
    %227 = vperm.xlu0 %226, %v149
    %v228 = vpop.permute.xlu0 %227
    %231 = vset.pattern.permute.xlu0 0
    %232 = vperm.xlu0 %231, %v150
    %v233 = vpop.permute.xlu0 %232
    %236 = vset.pattern.permute.xlu0 0
    %237 = vperm.xlu0 %236, %v151
    %v238 = vpop.permute.xlu0 %237
    %241 = vset.pattern.permute.xlu0 0
    %242 = vperm.xlu0 %241, %v152
    %v243 = vpop.permute.xlu0 %242
    %246 = vset.pattern.permute.xlu0 0
    %247 = vperm.xlu0 %246, %v153
    %v248 = vpop.permute.xlu0 %247
    %251 = vset.pattern.permute.xlu0 0
    %252 = vperm.xlu0 %251, %v154
    %v253 = vpop.permute.xlu0 %252
    %256 = vset.pattern.permute.xlu0 0
    %257 = vperm.xlu0 %256, %v155
    %v258 = vpop.permute.xlu0 %257
    %261 = vset.pattern.permute.xlu0 0
    %262 = vperm.xlu0 %261, %v156
    %v263 = vpop.permute.xlu0 %262
    %266 = vset.pattern.permute.xlu0 0
    %267 = vperm.xlu0 %266, %v157
    %v268 = vpop.permute.xlu0 %267
    %271 = vset.pattern.permute.xlu0 0
    %272 = vperm.xlu0 %271, %v158
    %v273 = vpop.permute.xlu0 %272
    %276 = vset.pattern.permute.xlu0 0
    %277 = vperm.xlu0 %276, %v159
    %v278 = vpop.permute.xlu0 %277
    %281 = vset.pattern.permute.xlu0 0
    %282 = vperm.xlu0 %281, %v160
    %v283 = vpop.permute.xlu0 %282
    %286 = vset.pattern.permute.xlu0 0
    %287 = vperm.xlu0 %286, %v161
    %v288 = vpop.permute.xlu0 %287
    %291 = vset.pattern.permute.xlu0 0
    %292 = vperm.xlu0 %291, %v162
    %v293 = vpop.permute.xlu0 %292
    %296 = vset.pattern.permute.xlu0 0
    %297 = vperm.xlu0 %296, %v163
    %v298 = vpop.permute.xlu0 %297
    %301 = vset.pattern.permute.xlu0 0
    %302 = vperm.xlu0 %301, %v164
    %v303 = vpop.permute.xlu0 %302
    %306 = vset.pattern.permute.xlu0 0
    %307 = vperm.xlu0 %306, %v165
    %v308 = vpop.permute.xlu0 %307
    %311 = vset.pattern.permute.xlu0 0
    %312 = vperm.xlu0 %311, %v166
    %v313 = vpop.permute.xlu0 %312
    %316 = vset.pattern.permute.xlu0 0
    %317 = vperm.xlu0 %316, %v167
    %v318 = vpop.permute.xlu0 %317
    %321 = vset.pattern.permute.xlu0 0
    %322 = vperm.xlu0 %321, %v168
    %v323 = vpop.permute.xlu0 %322
    %326 = vset.pattern.permute.xlu0 0
    %327 = vperm.xlu0 %326, %v169
    %v328 = vpop.permute.xlu0 %327
    %331 = vset.pattern.permute.xlu0 0
    %332 = vperm.xlu0 %331, %v170
    %v333 = vpop.permute.xlu0 %332
    %336 = vset.pattern.permute.xlu0 0
    %337 = vperm.xlu0 %336, %v171
    %v338 = vpop.permute.xlu0 %337
    %341 = vset.pattern.permute.xlu0 0
    %342 = vperm.xlu0 %341, %v172
    %v343 = vpop.permute.xlu0 %342
    %346 = vset.pattern.permute.xlu0 0
    %347 = vperm.xlu0 %346, %v173
    %v348 = vpop.permute.xlu0 %347
    %351 = vset.pattern.permute.xlu0 0
    %352 = vperm.xlu0 %351, %v174
    %v353 = vpop.permute.xlu0 %352
    %356 = vset.pattern.permute.xlu0 0
    %357 = vperm.xlu0 %356, %v175
    %v358 = vpop.permute.xlu0 %357
    %361 = vset.pattern.permute.xlu0 0
    %362 = vperm.xlu0 %361, %v176
    %v363 = vpop.permute.xlu0 %362
    %366 = vset.pattern.permute.xlu0 0
    %367 = vperm.xlu0 %366, %v177
    %v368 = vpop.permute.xlu0 %367
    %371 = vset.pattern.permute.xlu0 0
    %372 = vperm.xlu0 %371, %v178
    %v373 = vpop.permute.xlu0 %372
    %376 = vset.pattern.permute.xlu0 0
    %377 = vperm.xlu0 %376, %v179
    %v378 = vpop.permute.xlu0 %377
    %381 = vset.pattern.permute.xlu0 0
    %382 = vperm.xlu0 %381, %v180
    %v383 = vpop.permute.xlu0 %382
    %386 = vset.pattern.permute.xlu0 0
    %387 = vperm.xlu0 %386, %v181
    %v388 = vpop.permute.xlu0 %387
    %391 = vset.pattern.permute.xlu0 0
    %392 = vperm.xlu0 %391, %v182
    %v393 = vpop.permute.xlu0 %392
    %396 = vset.pattern.permute.xlu0 0
    %397 = vperm.xlu0 %396, %v183
    %v398 = vpop.permute.xlu0 %397
    %401 = vset.pattern.permute.xlu0 0
    %402 = vperm.xlu0 %401, %v184
    %v403 = vpop.permute.xlu0 %402
    %406 = vset.pattern.permute.xlu0 0
    %407 = vperm.xlu0 %406, %v185
    %v408 = vpop.permute.xlu0 %407
    %411 = vset.pattern.permute.xlu0 0
    %412 = vperm.xlu0 %411, %v186
    %v413 = vpop.permute.xlu0 %412
    %416 = vset.pattern.permute.xlu0 0
    %417 = vperm.xlu0 %416, %v187
    %v418 = vpop.permute.xlu0 %417
    %421 = vset.pattern.permute.xlu0 0
    %422 = vperm.xlu0 %421, %v188
    %v423 = vpop.permute.xlu0 %422
    %426 = vset.pattern.permute.xlu0 0
    %427 = vperm.xlu0 %426, %v189
    %v428 = vpop.permute.xlu0 %427
    %431 = vset.pattern.permute.xlu0 0
    %432 = vperm.xlu0 %431, %v190
    %v433 = vpop.permute.xlu0 %432
    %436 = vset.pattern.permute.xlu0 0
    %437 = vperm.xlu0 %436, %v191
    %v438 = vpop.permute.xlu0 %437
    %441 = vset.pattern.permute.xlu0 0
    %442 = vperm.xlu0 %441, %v192
    %v443 = vpop.permute.xlu0 %442
    %446 = vset.pattern.permute.xlu0 0
    %447 = vperm.xlu0 %446, %v193
    %v448 = vpop.permute.xlu0 %447
    %451 = vset.pattern.permute.xlu0 0
    %452 = vperm.xlu0 %451, %v194
    %v453 = vpop.permute.xlu0 %452
    %456 = vset.pattern.permute.xlu0 0
    %457 = vperm.xlu0 %456, %v195
    %v458 = vpop.permute.xlu0 %457
    %461 = vset.pattern.permute.xlu0 0
    %462 = vperm.xlu0 %461, %v196
    %v463 = vpop.permute.xlu0 %462
    %466 = vset.pattern.permute.xlu0 0
    %467 = vperm.xlu0 %466, %v197
    %v468 = vpop.permute.xlu0 %467
    %471 = vset.pattern.permute.xlu0 0
    %472 = vperm.xlu0 %471, %v198
    %v473 = vpop.permute.xlu0 %472
    %476 = vset.pattern.permute.xlu0 0
    %477 = vperm.xlu0 %476, %v199
    %v478 = vpop.permute.xlu0 %477
    %481 = vset.pattern.permute.xlu0 0
    %482 = vperm.xlu0 %481, %v200
    %v483 = vpop.permute.xlu0 %482
    %486 = vset.pattern.permute.xlu0 0
    %487 = vperm.xlu0 %486, %v201
    %v488 = vpop.permute.xlu0 %487
    %491 = vset.pattern.permute.xlu0 0
    %492 = vperm.xlu0 %491, %v202
    %v493 = vpop.permute.xlu0 %492
    %496 = vset.pattern.permute.xlu0 0
    %497 = vperm.xlu0 %496, %v203
    %v498 = vpop.permute.xlu0 %497
    %501 = vset.pattern.permute.xlu0 0
    %502 = vperm.xlu0 %501, %v204
    %v503 = vpop.permute.xlu0 %502
    %506 = vset.pattern.permute.xlu0 0
    %507 = vperm.xlu0 %506, %v205
    %v508 = vpop.permute.xlu0 %507
    %511 = vset.pattern.permute.xlu0 0
    %512 = vperm.xlu0 %511, %v206
    %v513 = vpop.permute.xlu0 %512
    %516 = vset.pattern.permute.xlu0 0
    %517 = vperm.xlu0 %516, %v207
    %v518 = vpop.permute.xlu0 %517
    %521 = vset.pattern.permute.xlu0 0
    %522 = vperm.xlu0 %521, %v208
    %v523 = vpop.permute.xlu0 %522
    %526 = vset.pattern.permute.xlu0 0
    %527 = vperm.xlu0 %526, %v209
    %v528 = vpop.permute.xlu0 %527
    %v594 = vunpack.c.l.b16 %v82
    %v595 = vunpack.c.l.b16 %v83
    %v596 = vunpack.c.l.b16 %v84
    %v597 = vunpack.c.l.b16 %v85
    %v598 = vunpack.c.l.b16 %v86
    %v599 = vunpack.c.l.b16 %v87
    %v600 = vunpack.c.l.b16 %v88
    %v601 = vunpack.c.l.b16 %v89
    %v602 = vunpack.c.l.b16 %v90
    %v603 = vunpack.c.l.b16 %v91
    %v604 = vunpack.c.l.b16 %v92
    %v605 = vunpack.c.l.b16 %v93
    %v606 = vunpack.c.l.b16 %v94
    %v607 = vunpack.c.l.b16 %v95
    %v608 = vunpack.c.l.b16 %v96
    %v609 = vunpack.c.l.b16 %v97
    %v610 = vunpack.c.l.b16 %v98
    %v611 = vunpack.c.l.b16 %v99
    %v612 = vunpack.c.l.b16 %v100
    %v613 = vunpack.c.l.b16 %v101
    %v614 = vunpack.c.l.b16 %v102
    %v615 = vunpack.c.l.b16 %v103
    %v616 = vunpack.c.l.b16 %v104
    %v617 = vunpack.c.l.b16 %v105
    %v618 = vunpack.c.l.b16 %v106
    %v619 = vunpack.c.l.b16 %v107
    %v620 = vunpack.c.l.b16 %v108
    %v621 = vunpack.c.l.b16 %v109
    %v622 = vunpack.c.l.b16 %v110
    %v623 = vunpack.c.l.b16 %v111
    %v624 = vunpack.c.l.b16 %v112
    %v625 = vunpack.c.l.b16 %v113
    %v626 = vunpack.c.l.b16 %v114
    %v627 = vunpack.c.l.b16 %v115
    %v628 = vunpack.c.l.b16 %v116
    %v629 = vunpack.c.l.b16 %v117
    %v630 = vunpack.c.l.b16 %v118
    %v631 = vunpack.c.l.b16 %v119
    %v632 = vunpack.c.l.b16 %v120
    %v633 = vunpack.c.l.b16 %v121
    %v634 = vunpack.c.l.b16 %v122
    %v635 = vunpack.c.l.b16 %v123
    %v636 = vunpack.c.l.b16 %v124
    %v637 = vunpack.c.l.b16 %v125
    %v638 = vunpack.c.l.b16 %v126
    %v639 = vunpack.c.l.b16 %v127
    %v640 = vunpack.c.l.b16 %v128
    %v641 = vunpack.c.l.b16 %v129
    %v642 = vunpack.c.l.b16 %v130
    %v643 = vunpack.c.l.b16 %v131
    %v644 = vunpack.c.l.b16 %v132
    %v645 = vunpack.c.l.b16 %v133
    %v646 = vunpack.c.l.b16 %v134
    %v647 = vunpack.c.l.b16 %v135
    %v648 = vunpack.c.l.b16 %v136
    %v649 = vunpack.c.l.b16 %v137
    %v650 = vunpack.c.l.b16 %v138
    %v651 = vunpack.c.l.b16 %v139
    %v652 = vunpack.c.l.b16 %v140
    %v653 = vunpack.c.l.b16 %v141
    %v654 = vunpack.c.l.b16 %v142
    %v655 = vunpack.c.l.b16 %v143
    %v656 = vunpack.c.l.b16 %v144
    %v657 = vunpack.c.l.b16 %v145
    %v658 = vpack.c.b16 %v595, %v594
    %v659 = vpack.c.b16 %v597, %v596
    %v660 = vpack.c.b16 %v599, %v598
    %v661 = vpack.c.b16 %v601, %v600
    %v662 = vpack.c.b16 %v603, %v602
    %v663 = vpack.c.b16 %v605, %v604
    %v664 = vpack.c.b16 %v607, %v606
    %v665 = vpack.c.b16 %v609, %v608
    %v666 = vpack.c.b16 %v611, %v610
    %v667 = vpack.c.b16 %v613, %v612
    %v668 = vpack.c.b16 %v615, %v614
    %v669 = vpack.c.b16 %v617, %v616
    %v670 = vpack.c.b16 %v619, %v618
    %v671 = vpack.c.b16 %v621, %v620
    %v672 = vpack.c.b16 %v623, %v622
    %v673 = vpack.c.b16 %v625, %v624
    %v674 = vpack.c.b16 %v627, %v626
    %v675 = vpack.c.b16 %v629, %v628
    %v676 = vpack.c.b16 %v631, %v630
    %v677 = vpack.c.b16 %v633, %v632
    %v678 = vpack.c.b16 %v635, %v634
    %v679 = vpack.c.b16 %v637, %v636
    %v680 = vpack.c.b16 %v639, %v638
    %v681 = vpack.c.b16 %v641, %v640
    %v682 = vpack.c.b16 %v643, %v642
    %v683 = vpack.c.b16 %v645, %v644
    %v684 = vpack.c.b16 %v647, %v646
    %v685 = vpack.c.b16 %v649, %v648
    %v686 = vpack.c.b16 %v651, %v650
    %v687 = vpack.c.b16 %v653, %v652
    %v688 = vpack.c.b16 %v655, %v654
    %v689 = vpack.c.b16 %v657, %v656
    %vm690 = vcmask 523264
    %v692 = vsel %vm690, %v658, 0
    %v695 = vsel %vm690, %v659, 0
    %v698 = vsel %vm690, %v660, 0
    %v701 = vsel %vm690, %v661, 0
    %v704 = vsel %vm690, %v662, 0
    %v707 = vsel %vm690, %v663, 0
    %v710 = vsel %vm690, %v664, 0
    %v713 = vsel %vm690, %v665, 0
    %v716 = vsel %vm690, %v666, 0
    %v719 = vsel %vm690, %v667, 0
    %v722 = vsel %vm690, %v668, 0
    %v725 = vsel %vm690, %v669, 0
    %v728 = vsel %vm690, %v670, 0
    %v731 = vsel %vm690, %v671, 0
    %v734 = vsel %vm690, %v672, 0
    %v737 = vsel %vm690, %v673, 0
    %v740 = vsel %vm690, %v674, 0
    %v743 = vsel %vm690, %v675, 0
    %v746 = vsel %vm690, %v676, 0
    %v749 = vsel %vm690, %v677, 0
    %v752 = vsel %vm690, %v678, 0
    %v755 = vsel %vm690, %v679, 0
    %v758 = vsel %vm690, %v680, 0
    %v761 = vsel %vm690, %v681, 0
    %v764 = vsel %vm690, %v682, 0
    %v767 = vsel %vm690, %v683, 0
    %v770 = vsel %vm690, %v684, 0
    %v773 = vsel %vm690, %v685, 0
    %v776 = vsel %vm690, %v686, 0
    %v779 = vsel %vm690, %v687, 0
    %v782 = vsel %vm690, %v688, 0
    %v785 = vsel %vm690, %v689, 0
    %v788 = vsel %vm690, %v66, 0
    %v791 = vsel %vm690, %v67, 0
    %v794 = vsel %vm690, %v68, 0
    %v797 = vsel %vm690, %v69, 0
    %v800 = vsel %vm690, %v70, 0
    %v803 = vsel %vm690, %v71, 0
    %v806 = vsel %vm690, %v72, 0
    %v809 = vsel %vm690, %v73, 0
    %v812 = vsel %vm690, %v74, 0
    %v815 = vsel %vm690, %v75, 0
    %v818 = vsel %vm690, %v76, 0
    %v821 = vsel %vm690, %v77, 0
    %v824 = vsel %vm690, %v78, 0
    %v827 = vsel %vm690, %v79, 0
    %v830 = vsel %vm690, %v80, 0
    %v833 = vsel %vm690, %v81, 0
    %835 = vmatprep.subr.bf16.mxu0 0
    %836 = vmatpush1.bf16.xpose.msra.mxu0 %v788
    %837 = vmatprep.subr.bf16.mxu0 0
    %838 = vmatpush1.bf16.xpose.msra.mxu0 %v791
    %839 = vmatprep.subr.bf16.mxu0 0
    %840 = vmatpush1.bf16.xpose.msra.mxu0 %v794
    %841 = vmatprep.subr.bf16.mxu0 0
    %842 = vmatpush1.bf16.xpose.msra.mxu0 %v797
    %843 = vmatprep.subr.bf16.mxu0 0
    %844 = vmatpush1.bf16.xpose.msra.mxu0 %v800
    %845 = vmatprep.subr.bf16.mxu0 0
    %846 = vmatpush1.bf16.xpose.msra.mxu0 %v803
    %847 = vmatprep.subr.bf16.mxu0 0
    %848 = vmatpush1.bf16.xpose.msra.mxu0 %v806
    %849 = vmatprep.subr.bf16.mxu0 0
    %850 = vmatpush1.bf16.xpose.msra.mxu0 %v809
    %851 = vmatprep.subr.bf16.mxu0 0
    %852 = vmatpush1.bf16.xpose.msra.mxu0 %v812
    %853 = vmatprep.subr.bf16.mxu0 0
    %854 = vmatpush1.bf16.xpose.msra.mxu0 %v815
    %855 = vmatprep.subr.bf16.mxu0 0
    %856 = vmatpush1.bf16.xpose.msra.mxu0 %v818
    %857 = vmatprep.subr.bf16.mxu0 0
    %858 = vmatpush1.bf16.xpose.msra.mxu0 %v821
    %859 = vmatprep.subr.bf16.mxu0 0
    %860 = vmatpush1.bf16.xpose.msra.mxu0 %v824
    %861 = vmatprep.subr.bf16.mxu0 0
    %862 = vmatpush1.bf16.xpose.msra.mxu0 %v827
    %863 = vmatprep.subr.bf16.mxu0 0
    %864 = vmatpush1.bf16.xpose.msra.mxu0 %v830
    %865 = vmatprep.subr.bf16.mxu0 0
    %866 = vmatpush1.bf16.xpose.msra.mxu0 %v833
    %867 = vmatprep.mubr.bf16.mxu0 0
    %868 = vmatmul.mubr.bf16.gmra.mrb[0].mxu0 %v692
    %v869 = vpop.f32.mrb[0].mxu0
    %v870 = vadd.f32 %v213, %v869
    %v871 = vpop.f32.mrb[0].mxu0
    %v872 = vadd.f32 %v213, %v871
    %v873 = vpop.f32.mrb[0].mxu0
    %v874 = vadd.f32 %v218, %v873
    %v875 = vpop.f32.mrb[0].mxu0
    %v876 = vadd.f32 %v218, %v875
    %877 = vmatprep.mubr.bf16.mxu0 0
    %878 = vmatmul.mubr.bf16.gmra.mrb[0].mxu0 %v695
    %v879 = vpop.f32.mrb[0].mxu0
    %v880 = vadd.f32 %v223, %v879
    %v881 = vpop.f32.mrb[0].mxu0
    %v882 = vadd.f32 %v223, %v881
    %v883 = vpop.f32.mrb[0].mxu0
    %v884 = vadd.f32 %v228, %v883
    %v885 = vpop.f32.mrb[0].mxu0
    %v886 = vadd.f32 %v228, %v885
    %887 = vmatprep.mubr.bf16.mxu0 0
    %888 = vmatmul.mubr.bf16.gmra.mrb[0].mxu0 %v698
    %v889 = vpop.f32.mrb[0].mxu0
    %v890 = vadd.f32 %v233, %v889
    %v891 = vpop.f32.mrb[0].mxu0
    %v892 = vadd.f32 %v233, %v891
    %v893 = vpop.f32.mrb[0].mxu0
    %v894 = vadd.f32 %v238, %v893
    %v895 = vpop.f32.mrb[0].mxu0
    %v896 = vadd.f32 %v238, %v895
    %897 = vmatprep.mubr.bf16.mxu0 0
    %898 = vmatmul.mubr.bf16.gmra.mrb[0].mxu0 %v701
    %v899 = vpop.f32.mrb[0].mxu0
    %v900 = vadd.f32 %v243, %v899
    %v901 = vpop.f32.mrb[0].mxu0
    %v902 = vadd.f32 %v243, %v901
    %v903 = vpop.f32.mrb[0].mxu0
    %v904 = vadd.f32 %v248, %v903
    %v905 = vpop.f32.mrb[0].mxu0
    %v906 = vadd.f32 %v248, %v905
    %907 = vmatprep.mubr.bf16.mxu0 0
    %908 = vmatmul.mubr.bf16.gmra.mrb[0].mxu0 %v704
    %v909 = vpop.f32.mrb[0].mxu0
    %v910 = vadd.f32 %v253, %v909
    %v911 = vpop.f32.mrb[0].mxu0
    %v912 = vadd.f32 %v253, %v911
    %v913 = vpop.f32.mrb[0].mxu0
    %v914 = vadd.f32 %v258, %v913
    %v915 = vpop.f32.mrb[0].mxu0
    %v916 = vadd.f32 %v258, %v915
    %917 = vmatprep.mubr.bf16.mxu0 0
    %918 = vmatmul.mubr.bf16.gmra.mrb[0].mxu0 %v707
    %v919 = vpop.f32.mrb[0].mxu0
    %v920 = vadd.f32 %v263, %v919
    %v921 = vpop.f32.mrb[0].mxu0
    %v922 = vadd.f32 %v263, %v921
    %v923 = vpop.f32.mrb[0].mxu0
    %v924 = vadd.f32 %v268, %v923
    %v925 = vpop.f32.mrb[0].mxu0
    %v926 = vadd.f32 %v268, %v925
    %927 = vmatprep.mubr.bf16.mxu0 0
    %928 = vmatmul.mubr.bf16.gmra.mrb[0].mxu0 %v710
    %v929 = vpop.f32.mrb[0].mxu0
    %v930 = vadd.f32 %v273, %v929
    %v931 = vpop.f32.mrb[0].mxu0
    %v932 = vadd.f32 %v273, %v931
    %v933 = vpop.f32.mrb[0].mxu0
    %v934 = vadd.f32 %v278, %v933
    %v935 = vpop.f32.mrb[0].mxu0
    %v936 = vadd.f32 %v278, %v935
    %937 = vmatprep.mubr.bf16.mxu0 0
    %938 = vmatmul.mubr.bf16.gmra.mrb[0].mxu0 %v713
    %v939 = vpop.f32.mrb[0].mxu0
    %v940 = vadd.f32 %v283, %v939
    %v941 = vpop.f32.mrb[0].mxu0
    %v942 = vadd.f32 %v283, %v941
    %v943 = vpop.f32.mrb[0].mxu0
    %v944 = vadd.f32 %v288, %v943
    %v945 = vpop.f32.mrb[0].mxu0
    %v946 = vadd.f32 %v288, %v945
    %947 = vmatprep.mubr.bf16.mxu0 0
    %948 = vmatmul.mubr.bf16.gmra.mrb[0].mxu0 %v716
    %v949 = vpop.f32.mrb[0].mxu0
    %v950 = vadd.f32 %v293, %v949
    %v951 = vpop.f32.mrb[0].mxu0
    %v952 = vadd.f32 %v293, %v951
    %v953 = vpop.f32.mrb[0].mxu0
    %v954 = vadd.f32 %v298, %v953
    %v955 = vpop.f32.mrb[0].mxu0
    %v956 = vadd.f32 %v298, %v955
    %957 = vmatprep.mubr.bf16.mxu0 0
    %958 = vmatmul.mubr.bf16.gmra.mrb[0].mxu0 %v719
    %v959 = vpop.f32.mrb[0].mxu0
    %v960 = vadd.f32 %v303, %v959
    %v961 = vpop.f32.mrb[0].mxu0
    %v962 = vadd.f32 %v303, %v961
    %v963 = vpop.f32.mrb[0].mxu0
    %v964 = vadd.f32 %v308, %v963
    %v965 = vpop.f32.mrb[0].mxu0
    %v966 = vadd.f32 %v308, %v965
    %967 = vmatprep.mubr.bf16.mxu0 0
    %968 = vmatmul.mubr.bf16.gmra.mrb[0].mxu0 %v722
    %v969 = vpop.f32.mrb[0].mxu0
    %v970 = vadd.f32 %v313, %v969
    %v971 = vpop.f32.mrb[0].mxu0
    %v972 = vadd.f32 %v313, %v971
    %v973 = vpop.f32.mrb[0].mxu0
    %v974 = vadd.f32 %v318, %v973
    %v975 = vpop.f32.mrb[0].mxu0
    %v976 = vadd.f32 %v318, %v975
    %977 = vmatprep.mubr.bf16.mxu0 0
    %978 = vmatmul.mubr.bf16.gmra.mrb[0].mxu0 %v725
    %v979 = vpop.f32.mrb[0].mxu0
    %v980 = vadd.f32 %v323, %v979
    %v981 = vpop.f32.mrb[0].mxu0
    %v982 = vadd.f32 %v323, %v981
    %v983 = vpop.f32.mrb[0].mxu0
    %v984 = vadd.f32 %v328, %v983
    %v985 = vpop.f32.mrb[0].mxu0
    %v986 = vadd.f32 %v328, %v985
    %987 = vmatprep.mubr.bf16.mxu0 0
    %988 = vmatmul.mubr.bf16.gmra.mrb[0].mxu0 %v728
    %v989 = vpop.f32.mrb[0].mxu0
    %v990 = vadd.f32 %v333, %v989
    %v991 = vpop.f32.mrb[0].mxu0
    %v992 = vadd.f32 %v333, %v991
    %v993 = vpop.f32.mrb[0].mxu0
    %v994 = vadd.f32 %v338, %v993
    %v995 = vpop.f32.mrb[0].mxu0
    %v996 = vadd.f32 %v338, %v995
    %997 = vmatprep.mubr.bf16.mxu0 0
    %998 = vmatmul.mubr.bf16.gmra.mrb[0].mxu0 %v731
    %v999 = vpop.f32.mrb[0].mxu0
    %v1000 = vadd.f32 %v343, %v999
    %v1001 = vpop.f32.mrb[0].mxu0
    %v1002 = vadd.f32 %v343, %v1001
    %v1003 = vpop.f32.mrb[0].mxu0
    %v1004 = vadd.f32 %v348, %v1003
    %v1005 = vpop.f32.mrb[0].mxu0
    %v1006 = vadd.f32 %v348, %v1005
    %1007 = vmatprep.mubr.bf16.mxu0 0
    %1008 = vmatmul.mubr.bf16.gmra.mrb[0].mxu0 %v734
    %v1009 = vpop.f32.mrb[0].mxu0
    %v1010 = vadd.f32 %v353, %v1009
    %v1011 = vpop.f32.mrb[0].mxu0
    %v1012 = vadd.f32 %v353, %v1011
    %v1013 = vpop.f32.mrb[0].mxu0
    %v1014 = vadd.f32 %v358, %v1013
    %v1015 = vpop.f32.mrb[0].mxu0
    %v1016 = vadd.f32 %v358, %v1015
    %1017 = vmatprep.mubr.bf16.mxu0 0
    %1018 = vmatmul.mubr.bf16.gmra.mrb[0].mxu0 %v737
    %v1019 = vpop.f32.mrb[0].mxu0
    %v1020 = vadd.f32 %v363, %v1019
    %v1021 = vpop.f32.mrb[0].mxu0
    %v1022 = vadd.f32 %v363, %v1021
    %v1023 = vpop.f32.mrb[0].mxu0
    %v1024 = vadd.f32 %v368, %v1023
    %v1025 = vpop.f32.mrb[0].mxu0
    %v1026 = vadd.f32 %v368, %v1025
    %1027 = vmatprep.mubr.bf16.mxu0 0
    %1028 = vmatmul.mubr.bf16.gmra.mrb[0].mxu0 %v740
    %v1029 = vpop.f32.mrb[0].mxu0
    %v1030 = vadd.f32 %v373, %v1029
    %v1031 = vpop.f32.mrb[0].mxu0
    %v1032 = vadd.f32 %v373, %v1031
    %v1033 = vpop.f32.mrb[0].mxu0
    %v1034 = vadd.f32 %v378, %v1033
    %v1035 = vpop.f32.mrb[0].mxu0
    %v1036 = vadd.f32 %v378, %v1035
    %1037 = vmatprep.mubr.bf16.mxu0 0
    %1038 = vmatmul.mubr.bf16.gmra.mrb[0].mxu0 %v743
    %v1039 = vpop.f32.mrb[0].mxu0
    %v1040 = vadd.f32 %v383, %v1039
    %v1041 = vpop.f32.mrb[0].mxu0
    %v1042 = vadd.f32 %v383, %v1041
    %v1043 = vpop.f32.mrb[0].mxu0
    %v1044 = vadd.f32 %v388, %v1043
    %v1045 = vpop.f32.mrb[0].mxu0
    %v1046 = vadd.f32 %v388, %v1045
    %1047 = vmatprep.mubr.bf16.mxu0 0
    %1048 = vmatmul.mubr.bf16.gmra.mrb[0].mxu0 %v746
    %v1049 = vpop.f32.mrb[0].mxu0
    %v1050 = vadd.f32 %v393, %v1049
    %v1051 = vpop.f32.mrb[0].mxu0
    %v1052 = vadd.f32 %v393, %v1051
    %v1053 = vpop.f32.mrb[0].mxu0
    %v1054 = vadd.f32 %v398, %v1053
    %v1055 = vpop.f32.mrb[0].mxu0
    %v1056 = vadd.f32 %v398, %v1055
    %1057 = vmatprep.mubr.bf16.mxu0 0
    %1058 = vmatmul.mubr.bf16.gmra.mrb[0].mxu0 %v749
    %v1059 = vpop.f32.mrb[0].mxu0
    %v1060 = vadd.f32 %v403, %v1059
    %v1061 = vpop.f32.mrb[0].mxu0
    %v1062 = vadd.f32 %v403, %v1061
    %v1063 = vpop.f32.mrb[0].mxu0
    %v1064 = vadd.f32 %v408, %v1063
    %v1065 = vpop.f32.mrb[0].mxu0
    %v1066 = vadd.f32 %v408, %v1065
    %1067 = vmatprep.mubr.bf16.mxu0 0
    %1068 = vmatmul.mubr.bf16.gmra.mrb[0].mxu0 %v752
    %v1069 = vpop.f32.mrb[0].mxu0
    %v1070 = vadd.f32 %v413, %v1069
    %v1071 = vpop.f32.mrb[0].mxu0
    %v1072 = vadd.f32 %v413, %v1071
    %v1073 = vpop.f32.mrb[0].mxu0
    %v1074 = vadd.f32 %v418, %v1073
    %v1075 = vpop.f32.mrb[0].mxu0
    %v1076 = vadd.f32 %v418, %v1075
    %1077 = vmatprep.mubr.bf16.mxu0 0
    %1078 = vmatmul.mubr.bf16.gmra.mrb[0].mxu0 %v755
    %v1079 = vpop.f32.mrb[0].mxu0
    %v1080 = vadd.f32 %v423, %v1079
    %v1081 = vpop.f32.mrb[0].mxu0
    %v1082 = vadd.f32 %v423, %v1081
    %v1083 = vpop.f32.mrb[0].mxu0
    %v1084 = vadd.f32 %v428, %v1083
    %v1085 = vpop.f32.mrb[0].mxu0
    %v1086 = vadd.f32 %v428, %v1085
    %1087 = vmatprep.mubr.bf16.mxu0 0
    %1088 = vmatmul.mubr.bf16.gmra.mrb[0].mxu0 %v758
    %v1089 = vpop.f32.mrb[0].mxu0
    %v1090 = vadd.f32 %v433, %v1089
    %v1091 = vpop.f32.mrb[0].mxu0
    %v1092 = vadd.f32 %v433, %v1091
    %v1093 = vpop.f32.mrb[0].mxu0
    %v1094 = vadd.f32 %v438, %v1093
    %v1095 = vpop.f32.mrb[0].mxu0
    %v1096 = vadd.f32 %v438, %v1095
    %1097 = vmatprep.mubr.bf16.mxu0 0
    %1098 = vmatmul.mubr.bf16.gmra.mrb[0].mxu0 %v761
    %v1099 = vpop.f32.mrb[0].mxu0
    %v1100 = vadd.f32 %v443, %v1099
    %v1101 = vpop.f32.mrb[0].mxu0
    %v1102 = vadd.f32 %v443, %v1101
    %v1103 = vpop.f32.mrb[0].mxu0
    %v1104 = vadd.f32 %v448, %v1103
    %v1105 = vpop.f32.mrb[0].mxu0
    %v1106 = vadd.f32 %v448, %v1105
    %1107 = vmatprep.mubr.bf16.mxu0 0
    %1108 = vmatmul.mubr.bf16.gmra.mrb[0].mxu0 %v764
    %v1109 = vpop.f32.mrb[0].mxu0
    %v1110 = vadd.f32 %v453, %v1109
    %v1111 = vpop.f32.mrb[0].mxu0
    %v1112 = vadd.f32 %v453, %v1111
    %v1113 = vpop.f32.mrb[0].mxu0
    %v1114 = vadd.f32 %v458, %v1113
    %v1115 = vpop.f32.mrb[0].mxu0
    %v1116 = vadd.f32 %v458, %v1115
    %1117 = vmatprep.mubr.bf16.mxu0 0
    %1118 = vmatmul.mubr.bf16.gmra.mrb[0].mxu0 %v767
    %v1119 = vpop.f32.mrb[0].mxu0
    %v1120 = vadd.f32 %v463, %v1119
    %v1121 = vpop.f32.mrb[0].mxu0
    %v1122 = vadd.f32 %v463, %v1121
    %v1123 = vpop.f32.mrb[0].mxu0
    %v1124 = vadd.f32 %v468, %v1123
    %v1125 = vpop.f32.mrb[0].mxu0
    %v1126 = vadd.f32 %v468, %v1125
    %1127 = vmatprep.mubr.bf16.mxu0 0
    %1128 = vmatmul.mubr.bf16.gmra.mrb[0].mxu0 %v770
    %v1129 = vpop.f32.mrb[0].mxu0
    %v1130 = vadd.f32 %v473, %v1129
    %v1131 = vpop.f32.mrb[0].mxu0
    %v1132 = vadd.f32 %v473, %v1131
    %v1133 = vpop.f32.mrb[0].mxu0
    %v1134 = vadd.f32 %v478, %v1133
    %v1135 = vpop.f32.mrb[0].mxu0
    %v1136 = vadd.f32 %v478, %v1135
    %1137 = vmatprep.mubr.bf16.mxu0 0
    %1138 = vmatmul.mubr.bf16.gmra.mrb[0].mxu0 %v773
    %v1139 = vpop.f32.mrb[0].mxu0
    %v1140 = vadd.f32 %v483, %v1139
    %v1141 = vpop.f32.mrb[0].mxu0
    %v1142 = vadd.f32 %v483, %v1141
    %v1143 = vpop.f32.mrb[0].mxu0
    %v1144 = vadd.f32 %v488, %v1143
    %v1145 = vpop.f32.mrb[0].mxu0
    %v1146 = vadd.f32 %v488, %v1145
    %1147 = vmatprep.mubr.bf16.mxu0 0
    %1148 = vmatmul.mubr.bf16.gmra.mrb[0].mxu0 %v776
    %v1149 = vpop.f32.mrb[0].mxu0
    %v1150 = vadd.f32 %v493, %v1149
    %v1151 = vpop.f32.mrb[0].mxu0
    %v1152 = vadd.f32 %v493, %v1151
    %v1153 = vpop.f32.mrb[0].mxu0
    %v1154 = vadd.f32 %v498, %v1153
    %v1155 = vpop.f32.mrb[0].mxu0
    %v1156 = vadd.f32 %v498, %v1155
    %1157 = vmatprep.mubr.bf16.mxu0 0
    %1158 = vmatmul.mubr.bf16.gmra.mrb[0].mxu0 %v779
    %v1159 = vpop.f32.mrb[0].mxu0
    %v1160 = vadd.f32 %v503, %v1159
    %v1161 = vpop.f32.mrb[0].mxu0
    %v1162 = vadd.f32 %v503, %v1161
    %v1163 = vpop.f32.mrb[0].mxu0
    %v1164 = vadd.f32 %v508, %v1163
    %v1165 = vpop.f32.mrb[0].mxu0
    %v1166 = vadd.f32 %v508, %v1165
    %1167 = vmatprep.mubr.bf16.mxu0 0
    %1168 = vmatmul.mubr.bf16.gmra.mrb[0].mxu0 %v782
    %v1169 = vpop.f32.mrb[0].mxu0
    %v1170 = vadd.f32 %v513, %v1169
    %v1171 = vpop.f32.mrb[0].mxu0
    %v1172 = vadd.f32 %v513, %v1171
    %v1173 = vpop.f32.mrb[0].mxu0
    %v1174 = vadd.f32 %v518, %v1173
    %v1175 = vpop.f32.mrb[0].mxu0
    %v1176 = vadd.f32 %v518, %v1175
    %1177 = vmatprep.mubr.bf16.mxu0 0
    %1178 = vmatmul.mubr.bf16.gmra.mrb[0].mxu0 %v785
    %v1179 = vpop.f32.mrb[0].mxu0
    %v1180 = vadd.f32 %v523, %v1179
    %v1181 = vpop.f32.mrb[0].mxu0
    %v1182 = vadd.f32 %v523, %v1181
    %v1183 = vpop.f32.mrb[0].mxu0
    %v1184 = vadd.f32 %v528, %v1183
    %v1185 = vpop.f32.mrb[0].mxu0
    %v1186 = vadd.f32 %v528, %v1185
    %1187 = vdwg.mxu0
    %v1188 = vmax.f32 %v870, 0.0
    %v1189 = vmax.f32 %v872, 0.0
    %v1190 = vmax.f32 %v874, 0.0
    %v1191 = vmax.f32 %v876, 0.0
    %v1192 = vmax.f32 %v880, 0.0
    %v1193 = vmax.f32 %v882, 0.0
    %v1194 = vmax.f32 %v884, 0.0
    %v1195 = vmax.f32 %v886, 0.0
    %v1196 = vmax.f32 %v890, 0.0
    %v1197 = vmax.f32 %v892, 0.0
    %v1198 = vmax.f32 %v894, 0.0
    %v1199 = vmax.f32 %v896, 0.0
    %v1200 = vmax.f32 %v900, 0.0
    %v1201 = vmax.f32 %v902, 0.0
    %v1202 = vmax.f32 %v904, 0.0
    %v1203 = vmax.f32 %v906, 0.0
    %v1204 = vmax.f32 %v910, 0.0
    %v1205 = vmax.f32 %v912, 0.0
    %v1206 = vmax.f32 %v914, 0.0
    %v1207 = vmax.f32 %v916, 0.0
    %v1208 = vmax.f32 %v920, 0.0
    %v1209 = vmax.f32 %v922, 0.0
    %v1210 = vmax.f32 %v924, 0.0
    %v1211 = vmax.f32 %v926, 0.0
    %v1212 = vmax.f32 %v930, 0.0
    %v1213 = vmax.f32 %v932, 0.0
    %v1214 = vmax.f32 %v934, 0.0
    %v1215 = vmax.f32 %v936, 0.0
    %v1216 = vmax.f32 %v940, 0.0
    %v1217 = vmax.f32 %v942, 0.0
    %v1218 = vmax.f32 %v944, 0.0
    %v1219 = vmax.f32 %v946, 0.0
    %v1220 = vmax.f32 %v950, 0.0
    %v1221 = vmax.f32 %v952, 0.0
    %v1222 = vmax.f32 %v954, 0.0
    %v1223 = vmax.f32 %v956, 0.0
    %v1224 = vmax.f32 %v960, 0.0
    %v1225 = vmax.f32 %v962, 0.0
    %v1226 = vmax.f32 %v964, 0.0
    %v1227 = vmax.f32 %v966, 0.0
    %v1228 = vmax.f32 %v970, 0.0
    %v1229 = vmax.f32 %v972, 0.0
    %v1230 = vmax.f32 %v974, 0.0
    %v1231 = vmax.f32 %v976, 0.0
    %v1232 = vmax.f32 %v980, 0.0
    %v1233 = vmax.f32 %v982, 0.0
    %v1234 = vmax.f32 %v984, 0.0
    %v1235 = vmax.f32 %v986, 0.0
    %v1236 = vmax.f32 %v990, 0.0
    %v1237 = vmax.f32 %v992, 0.0
    %v1238 = vmax.f32 %v994, 0.0
    %v1239 = vmax.f32 %v996, 0.0
    %v1240 = vmax.f32 %v1000, 0.0
    %v1241 = vmax.f32 %v1002, 0.0
    %v1242 = vmax.f32 %v1004, 0.0
    %v1243 = vmax.f32 %v1006, 0.0
    %v1244 = vmax.f32 %v1010, 0.0
    %v1245 = vmax.f32 %v1012, 0.0
    %v1246 = vmax.f32 %v1014, 0.0
    %v1247 = vmax.f32 %v1016, 0.0
    %v1248 = vmax.f32 %v1020, 0.0
    %v1249 = vmax.f32 %v1022, 0.0
    %v1250 = vmax.f32 %v1024, 0.0
    %v1251 = vmax.f32 %v1026, 0.0
    %v1252 = vmax.f32 %v1030, 0.0
    %v1253 = vmax.f32 %v1032, 0.0
    %v1254 = vmax.f32 %v1034, 0.0
    %v1255 = vmax.f32 %v1036, 0.0
    %v1256 = vmax.f32 %v1040, 0.0
    %v1257 = vmax.f32 %v1042, 0.0
    %v1258 = vmax.f32 %v1044, 0.0
    %v1259 = vmax.f32 %v1046, 0.0
    %v1260 = vmax.f32 %v1050, 0.0
    %v1261 = vmax.f32 %v1052, 0.0
    %v1262 = vmax.f32 %v1054, 0.0
    %v1263 = vmax.f32 %v1056, 0.0
    %v1264 = vmax.f32 %v1060, 0.0
    %v1265 = vmax.f32 %v1062, 0.0
    %v1266 = vmax.f32 %v1064, 0.0
    %v1267 = vmax.f32 %v1066, 0.0
    %v1268 = vmax.f32 %v1070, 0.0
    %v1269 = vmax.f32 %v1072, 0.0
    %v1270 = vmax.f32 %v1074, 0.0
    %v1271 = vmax.f32 %v1076, 0.0
    %v1272 = vmax.f32 %v1080, 0.0
    %v1273 = vmax.f32 %v1082, 0.0
    %v1274 = vmax.f32 %v1084, 0.0
    %v1275 = vmax.f32 %v1086, 0.0
    %v1276 = vmax.f32 %v1090, 0.0
    %v1277 = vmax.f32 %v1092, 0.0
    %v1278 = vmax.f32 %v1094, 0.0
    %v1279 = vmax.f32 %v1096, 0.0
    %v1280 = vmax.f32 %v1100, 0.0
    %v1281 = vmax.f32 %v1102, 0.0
    %v1282 = vmax.f32 %v1104, 0.0
    %v1283 = vmax.f32 %v1106, 0.0
    %v1284 = vmax.f32 %v1110, 0.0
    %v1285 = vmax.f32 %v1112, 0.0
    %v1286 = vmax.f32 %v1114, 0.0
    %v1287 = vmax.f32 %v1116, 0.0
    %v1288 = vmax.f32 %v1120, 0.0
    %v1289 = vmax.f32 %v1122, 0.0
    %v1290 = vmax.f32 %v1124, 0.0
    %v1291 = vmax.f32 %v1126, 0.0
    %v1292 = vmax.f32 %v1130, 0.0
    %v1293 = vmax.f32 %v1132, 0.0
    %v1294 = vmax.f32 %v1134, 0.0
    %v1295 = vmax.f32 %v1136, 0.0
    %v1296 = vmax.f32 %v1140, 0.0
    %v1297 = vmax.f32 %v1142, 0.0
    %v1298 = vmax.f32 %v1144, 0.0
    %v1299 = vmax.f32 %v1146, 0.0
    %v1300 = vmax.f32 %v1150, 0.0
    %v1301 = vmax.f32 %v1152, 0.0
    %v1302 = vmax.f32 %v1154, 0.0
    %v1303 = vmax.f32 %v1156, 0.0
    %v1304 = vmax.f32 %v1160, 0.0
    %v1305 = vmax.f32 %v1162, 0.0
    %v1306 = vmax.f32 %v1164, 0.0
    %v1307 = vmax.f32 %v1166, 0.0
    %v1308 = vmax.f32 %v1170, 0.0
    %v1309 = vmax.f32 %v1172, 0.0
    %v1310 = vmax.f32 %v1174, 0.0
    %v1311 = vmax.f32 %v1176, 0.0
    %v1312 = vmax.f32 %v1180, 0.0
    %v1313 = vmax.f32 %v1182, 0.0
    %v1314 = vmax.f32 %v1184, 0.0
    %v1315 = vmax.f32 %v1186, 0.0
    %v1316 = vpack.c.bf16 %v1190, %v1188
    %v1317 = vpack.c.bf16 %v1191, %v1189
    %v1318 = vpack.c.bf16 %v1194, %v1192
    %v1319 = vpack.c.bf16 %v1195, %v1193
    %v1320 = vpack.c.bf16 %v1198, %v1196
    %v1321 = vpack.c.bf16 %v1199, %v1197
    %v1322 = vpack.c.bf16 %v1202, %v1200
    %v1323 = vpack.c.bf16 %v1203, %v1201
    %v1324 = vpack.c.bf16 %v1206, %v1204
    %v1325 = vpack.c.bf16 %v1207, %v1205
    %v1326 = vpack.c.bf16 %v1210, %v1208
    %v1327 = vpack.c.bf16 %v1211, %v1209
    %v1328 = vpack.c.bf16 %v1214, %v1212
    %v1329 = vpack.c.bf16 %v1215, %v1213
    %v1330 = vpack.c.bf16 %v1218, %v1216
    %v1331 = vpack.c.bf16 %v1219, %v1217
    %v1332 = vpack.c.bf16 %v1222, %v1220
    %v1333 = vpack.c.bf16 %v1223, %v1221
    %v1334 = vpack.c.bf16 %v1226, %v1224
    %v1335 = vpack.c.bf16 %v1227, %v1225
    %v1336 = vpack.c.bf16 %v1230, %v1228
    %v1337 = vpack.c.bf16 %v1231, %v1229
    %v1338 = vpack.c.bf16 %v1234, %v1232
    %v1339 = vpack.c.bf16 %v1235, %v1233
    %v1340 = vpack.c.bf16 %v1238, %v1236
    %v1341 = vpack.c.bf16 %v1239, %v1237
    %v1342 = vpack.c.bf16 %v1242, %v1240
    %v1343 = vpack.c.bf16 %v1243, %v1241
    %v1344 = vpack.c.bf16 %v1246, %v1244
    %v1345 = vpack.c.bf16 %v1247, %v1245
    %v1346 = vpack.c.bf16 %v1250, %v1248
    %v1347 = vpack.c.bf16 %v1251, %v1249
    %v1348 = vpack.c.bf16 %v1254, %v1252
    %v1349 = vpack.c.bf16 %v1255, %v1253
    %v1350 = vpack.c.bf16 %v1258, %v1256
    %v1351 = vpack.c.bf16 %v1259, %v1257
    %v1352 = vpack.c.bf16 %v1262, %v1260
    %v1353 = vpack.c.bf16 %v1263, %v1261
    %v1354 = vpack.c.bf16 %v1266, %v1264
    %v1355 = vpack.c.bf16 %v1267, %v1265
    %v1356 = vpack.c.bf16 %v1270, %v1268
    %v1357 = vpack.c.bf16 %v1271, %v1269
    %v1358 = vpack.c.bf16 %v1274, %v1272
    %v1359 = vpack.c.bf16 %v1275, %v1273
    %v1360 = vpack.c.bf16 %v1278, %v1276
    %v1361 = vpack.c.bf16 %v1279, %v1277
    %v1362 = vpack.c.bf16 %v1282, %v1280
    %v1363 = vpack.c.bf16 %v1283, %v1281
    %v1364 = vpack.c.bf16 %v1286, %v1284
    %v1365 = vpack.c.bf16 %v1287, %v1285
    %v1366 = vpack.c.bf16 %v1290, %v1288
    %v1367 = vpack.c.bf16 %v1291, %v1289
    %v1368 = vpack.c.bf16 %v1294, %v1292
    %v1369 = vpack.c.bf16 %v1295, %v1293
    %v1370 = vpack.c.bf16 %v1298, %v1296
    %v1371 = vpack.c.bf16 %v1299, %v1297
    %v1372 = vpack.c.bf16 %v1302, %v1300
    %v1373 = vpack.c.bf16 %v1303, %v1301
    %v1374 = vpack.c.bf16 %v1306, %v1304
    %v1375 = vpack.c.bf16 %v1307, %v1305
    %v1376 = vpack.c.bf16 %v1310, %v1308
    %v1377 = vpack.c.bf16 %v1311, %v1309
    %v1378 = vpack.c.bf16 %v1314, %v1312
    %v1379 = vpack.c.bf16 %v1315, %v1313
    %v1380 = vld [vmem:[%s3] sm:$0xff]
    %v1381 = vld [vmem:[%s3 + $0x8] sm:$0xff]
    %v1382 = vld [vmem:[%s3 + $0x10] sm:$0xff]
    %v1383 = vld [vmem:[%s3 + $0x18] sm:$0xff]
    %v1384 = vld [vmem:[%s3 + $0x20] sm:$0xff]
    %v1385 = vld [vmem:[%s3 + $0x28] sm:$0xff]
    %v1386 = vld [vmem:[%s3 + $0x30] sm:$0xff]
    %v1387 = vld [vmem:[%s3 + $0x38] sm:$0xff]
    %v1388 = vld [vmem:[%s3 + $0x40] sm:$0xff]
    %v1389 = vld [vmem:[%s3 + $0x48] sm:$0xff]
    %v1390 = vld [vmem:[%s3 + $0x50] sm:$0xff]
    %v1391 = vld [vmem:[%s3 + $0x58] sm:$0xff]
    %v1392 = vld [vmem:[%s3 + $0x60] sm:$0xff]
    %v1393 = vld [vmem:[%s3 + $0x68] sm:$0xff]
    %v1394 = vld [vmem:[%s3 + $0x70] sm:$0xff]
    %v1395 = vld [vmem:[%s3 + $0x78] sm:$0xff]
    %v1396 = vld [vmem:[%s3 + $0x80] sm:$0xff]
    %v1397 = vld [vmem:[%s3 + $0x88] sm:$0xff]
    %v1398 = vld [vmem:[%s3 + $0x90] sm:$0xff]
    %v1399 = vld [vmem:[%s3 + $0x98] sm:$0xff]
    %v1400 = vld [vmem:[%s3 + $0xa0] sm:$0xff]
    %v1401 = vld [vmem:[%s3 + $0xa8] sm:$0xff]
    %v1402 = vld [vmem:[%s3 + $0xb0] sm:$0xff]
    %v1403 = vld [vmem:[%s3 + $0xb8] sm:$0xff]
    %v1404 = vld [vmem:[%s3 + $0xc0] sm:$0xff]
    %v1405 = vld [vmem:[%s3 + $0xc8] sm:$0xff]
    %v1406 = vld [vmem:[%s3 + $0xd0] sm:$0xff]
    %v1407 = vld [vmem:[%s3 + $0xd8] sm:$0xff]
    %v1408 = vld [vmem:[%s3 + $0xe0] sm:$0xff]
    %v1409 = vld [vmem:[%s3 + $0xe8] sm:$0xff]
    %v1410 = vld [vmem:[%s3 + $0xf0] sm:$0xff]
    %v1411 = vld [vmem:[%s3 + $0xf8] sm:$0xff]
    %v1412 = vld [vmem:[%s4] sm:$0xff]
    %v1413 = vld [vmem:[%s4 + $0x8] sm:$0xff]
    %v1414 = vld [vmem:[%s4 + $0x10] sm:$0xff]
    %v1415 = vld [vmem:[%s4 + $0x18] sm:$0xff]
    %v1416 = vld [vmem:[%s4 + $0x20] sm:$0xff]
    %v1417 = vld [vmem:[%s4 + $0x28] sm:$0xff]
    %v1418 = vld [vmem:[%s4 + $0x30] sm:$0xff]
    %v1419 = vld [vmem:[%s4 + $0x38] sm:$0xff]
    %v1420 = vld [vmem:[%s4 + $0x40] sm:$0xff]
    %v1421 = vld [vmem:[%s4 + $0x48] sm:$0xff]
    %v1422 = vld [vmem:[%s4 + $0x50] sm:$0xff]
    %v1423 = vld [vmem:[%s4 + $0x58] sm:$0xff]
    %v1424 = vld [vmem:[%s4 + $0x60] sm:$0xff]
    %v1425 = vld [vmem:[%s4 + $0x68] sm:$0xff]
    %v1426 = vld [vmem:[%s4 + $0x70] sm:$0xff]
    %v1427 = vld [vmem:[%s4 + $0x78] sm:$0xff]
    %1429 = vset.pattern.permute.xlu0 0
    %1430 = vperm.xlu0 %1429, %v1412
    %v1431 = vpop.permute.xlu0 %1430
    %1434 = vset.pattern.permute.xlu0 0
    %1435 = vperm.xlu0 %1434, %v1413
    %v1436 = vpop.permute.xlu0 %1435
    %1439 = vset.pattern.permute.xlu0 0
    %1440 = vperm.xlu0 %1439, %v1414
    %v1441 = vpop.permute.xlu0 %1440
    %1444 = vset.pattern.permute.xlu0 0
    %1445 = vperm.xlu0 %1444, %v1415
    %v1446 = vpop.permute.xlu0 %1445
    %1449 = vset.pattern.permute.xlu0 0
    %1450 = vperm.xlu0 %1449, %v1416
    %v1451 = vpop.permute.xlu0 %1450
    %1454 = vset.pattern.permute.xlu0 0
    %1455 = vperm.xlu0 %1454, %v1417
    %v1456 = vpop.permute.xlu0 %1455
    %1459 = vset.pattern.permute.xlu0 0
    %1460 = vperm.xlu0 %1459, %v1418
    %v1461 = vpop.permute.xlu0 %1460
    %1464 = vset.pattern.permute.xlu0 0
    %1465 = vperm.xlu0 %1464, %v1419
    %v1466 = vpop.permute.xlu0 %1465
    %1469 = vset.pattern.permute.xlu0 0
    %1470 = vperm.xlu0 %1469, %v1420
    %v1471 = vpop.permute.xlu0 %1470
    %1474 = vset.pattern.permute.xlu0 0
    %1475 = vperm.xlu0 %1474, %v1421
    %v1476 = vpop.permute.xlu0 %1475
    %1479 = vset.pattern.permute.xlu0 0
    %1480 = vperm.xlu0 %1479, %v1422
    %v1481 = vpop.permute.xlu0 %1480
    %1484 = vset.pattern.permute.xlu0 0
    %1485 = vperm.xlu0 %1484, %v1423
    %v1486 = vpop.permute.xlu0 %1485
    %1489 = vset.pattern.permute.xlu0 0
    %1490 = vperm.xlu0 %1489, %v1424
    %v1491 = vpop.permute.xlu0 %1490
    %1494 = vset.pattern.permute.xlu0 0
    %1495 = vperm.xlu0 %1494, %v1425
    %v1496 = vpop.permute.xlu0 %1495
    %1499 = vset.pattern.permute.xlu0 0
    %1500 = vperm.xlu0 %1499, %v1426
    %v1501 = vpop.permute.xlu0 %1500
    %1504 = vset.pattern.permute.xlu0 0
    %1505 = vperm.xlu0 %1504, %v1427
    %v1506 = vpop.permute.xlu0 %1505
    %v1540 = vunpack.c.l.b16 %v1380
    %v1541 = vunpack.c.h.b16 %v1380
    %v1542 = vunpack.c.l.b16 %v1381
    %v1543 = vunpack.c.h.b16 %v1381
    %v1544 = vunpack.c.l.b16 %v1382
    %v1545 = vunpack.c.h.b16 %v1382
    %v1546 = vunpack.c.l.b16 %v1383
    %v1547 = vunpack.c.h.b16 %v1383
    %v1548 = vunpack.c.l.b16 %v1384
    %v1549 = vunpack.c.h.b16 %v1384
    %v1550 = vunpack.c.l.b16 %v1385
    %v1551 = vunpack.c.h.b16 %v1385
    %v1552 = vunpack.c.l.b16 %v1386
    %v1553 = vunpack.c.h.b16 %v1386
    %v1554 = vunpack.c.l.b16 %v1387
    %v1555 = vunpack.c.h.b16 %v1387
    %v1556 = vunpack.c.l.b16 %v1388
    %v1557 = vunpack.c.h.b16 %v1388
    %v1558 = vunpack.c.l.b16 %v1389
    %v1559 = vunpack.c.h.b16 %v1389
    %v1560 = vunpack.c.l.b16 %v1390
    %v1561 = vunpack.c.h.b16 %v1390
    %v1562 = vunpack.c.l.b16 %v1391
    %v1563 = vunpack.c.h.b16 %v1391
    %v1564 = vunpack.c.l.b16 %v1392
    %v1565 = vunpack.c.h.b16 %v1392
    %v1566 = vunpack.c.l.b16 %v1393
    %v1567 = vunpack.c.h.b16 %v1393
    %v1568 = vunpack.c.l.b16 %v1394
    %v1569 = vunpack.c.h.b16 %v1394
    %v1570 = vunpack.c.l.b16 %v1395
    %v1571 = vunpack.c.h.b16 %v1395
    %v1572 = vunpack.c.l.b16 %v1396
    %v1573 = vunpack.c.h.b16 %v1396
    %v1574 = vunpack.c.l.b16 %v1397
    %v1575 = vunpack.c.h.b16 %v1397
    %v1576 = vunpack.c.l.b16 %v1398
    %v1577 = vunpack.c.h.b16 %v1398
    %v1578 = vunpack.c.l.b16 %v1399
    %v1579 = vunpack.c.h.b16 %v1399
    %v1580 = vunpack.c.l.b16 %v1400
    %v1581 = vunpack.c.h.b16 %v1400
    %v1582 = vunpack.c.l.b16 %v1401
    %v1583 = vunpack.c.h.b16 %v1401
    %v1584 = vunpack.c.l.b16 %v1402
    %v1585 = vunpack.c.h.b16 %v1402
    %v1586 = vunpack.c.l.b16 %v1403
    %v1587 = vunpack.c.h.b16 %v1403
    %v1588 = vunpack.c.l.b16 %v1404
    %v1589 = vunpack.c.h.b16 %v1404
    %v1590 = vunpack.c.l.b16 %v1405
    %v1591 = vunpack.c.h.b16 %v1405
    %v1592 = vunpack.c.l.b16 %v1406
    %v1593 = vunpack.c.h.b16 %v1406
    %v1594 = vunpack.c.l.b16 %v1407
    %v1595 = vunpack.c.h.b16 %v1407
    %v1596 = vunpack.c.l.b16 %v1408
    %v1597 = vunpack.c.h.b16 %v1408
    %v1598 = vunpack.c.l.b16 %v1409
    %v1599 = vunpack.c.h.b16 %v1409
    %v1600 = vunpack.c.l.b16 %v1410
    %v1601 = vunpack.c.h.b16 %v1410
    %v1602 = vunpack.c.l.b16 %v1411
    %v1603 = vunpack.c.h.b16 %v1411
    %v1604 = vpack.c.b16 %v1544, %v1540
    %v1605 = vpack.c.b16 %v1545, %v1541
    %v1606 = vpack.c.b16 %v1546, %v1542
    %v1607 = vpack.c.b16 %v1547, %v1543
    %v1608 = vpack.c.b16 %v1552, %v1548
    %v1609 = vpack.c.b16 %v1553, %v1549
    %v1610 = vpack.c.b16 %v1554, %v1550
    %v1611 = vpack.c.b16 %v1555, %v1551
    %v1612 = vpack.c.b16 %v1560, %v1556
    %v1613 = vpack.c.b16 %v1561, %v1557
    %v1614 = vpack.c.b16 %v1562, %v1558
    %v1615 = vpack.c.b16 %v1563, %v1559
    %v1616 = vpack.c.b16 %v1568, %v1564
    %v1617 = vpack.c.b16 %v1569, %v1565
    %v1618 = vpack.c.b16 %v1570, %v1566
    %v1619 = vpack.c.b16 %v1571, %v1567
    %v1620 = vpack.c.b16 %v1576, %v1572
    %v1621 = vpack.c.b16 %v1577, %v1573
    %v1622 = vpack.c.b16 %v1578, %v1574
    %v1623 = vpack.c.b16 %v1579, %v1575
    %v1624 = vpack.c.b16 %v1584, %v1580
    %v1625 = vpack.c.b16 %v1585, %v1581
    %v1626 = vpack.c.b16 %v1586, %v1582
    %v1627 = vpack.c.b16 %v1587, %v1583
    %v1628 = vpack.c.b16 %v1592, %v1588
    %v1629 = vpack.c.b16 %v1593, %v1589
    %v1630 = vpack.c.b16 %v1594, %v1590
    %v1631 = vpack.c.b16 %v1595, %v1591
    %v1632 = vpack.c.b16 %v1600, %v1596
    %v1633 = vpack.c.b16 %v1601, %v1597
    %v1634 = vpack.c.b16 %v1602, %v1598
    %v1635 = vpack.c.b16 %v1603, %v1599
    %1668 = vmatprep.subr.bf16.mxu0 %v1317
    %1669 = vmatpush1.bf16.msra.mxu0 %v1316
    %1670 = vmatprep.subr.bf16.mxu0 %v1319
    %1671 = vmatpush1.bf16.msra.mxu0 %v1318
    %1672 = vmatprep.subr.bf16.mxu0 %v1321
    %1673 = vmatpush1.bf16.msra.mxu0 %v1320
    %1674 = vmatprep.subr.bf16.mxu0 %v1323
    %1675 = vmatpush1.bf16.msra.mxu0 %v1322
    %1676 = vmatprep.subr.bf16.mxu0 %v1325
    %1677 = vmatpush1.bf16.msra.mxu0 %v1324
    %1678 = vmatprep.subr.bf16.mxu0 %v1327
    %1679 = vmatpush1.bf16.msra.mxu0 %v1326
    %1680 = vmatprep.subr.bf16.mxu0 %v1329
    %1681 = vmatpush1.bf16.msra.mxu0 %v1328
    %1682 = vmatprep.subr.bf16.mxu0 %v1331
    %1683 = vmatpush1.bf16.msra.mxu0 %v1330
    %1684 = vmatprep.subr.bf16.mxu0 %v1333
    %1685 = vmatpush1.bf16.msra.mxu0 %v1332
    %1686 = vmatprep.subr.bf16.mxu0 %v1335
    %1687 = vmatpush1.bf16.msra.mxu0 %v1334
    %1688 = vmatprep.subr.bf16.mxu0 %v1337
    %1689 = vmatpush1.bf16.msra.mxu0 %v1336
    %1690 = vmatprep.subr.bf16.mxu0 %v1339
    %1691 = vmatpush1.bf16.msra.mxu0 %v1338
    %1692 = vmatprep.subr.bf16.mxu0 %v1341
    %1693 = vmatpush1.bf16.msra.mxu0 %v1340
    %1694 = vmatprep.subr.bf16.mxu0 %v1343
    %1695 = vmatpush1.bf16.msra.mxu0 %v1342
    %1696 = vmatprep.subr.bf16.mxu0 %v1345
    %1697 = vmatpush1.bf16.msra.mxu0 %v1344
    %1698 = vmatprep.subr.bf16.mxu0 %v1347
    %1699 = vmatpush1.bf16.msra.mxu0 %v1346
    %1700 = vmatprep.mubr.bf16.mxu0 %v1605
    %1701 = vmatmul.mubr.bf16.gmra.mrb[0].mxu0 %v1604
    %v1702 = vpop.f32.mrb[0].mxu0
    %v1703 = vadd.f32 %v1431, %v1702
    %v1704 = vpop.f32.mrb[0].mxu0
    %v1705 = vadd.f32 %v1431, %v1704
    %v1706 = vpop.f32.mrb[0].mxu0
    %v1707 = vadd.f32 %v1436, %v1706
    %v1708 = vpop.f32.mrb[0].mxu0
    %v1709 = vadd.f32 %v1436, %v1708
    %1710 = vmatprep.mubr.bf16.mxu0 %v1609
    %1711 = vmatmul.mubr.bf16.gmra.mrb[0].mxu0 %v1608
    %v1712 = vpop.f32.mrb[0].mxu0
    %v1713 = vadd.f32 %v1441, %v1712
    %v1714 = vpop.f32.mrb[0].mxu0
    %v1715 = vadd.f32 %v1441, %v1714
    %v1716 = vpop.f32.mrb[0].mxu0
    %v1717 = vadd.f32 %v1446, %v1716
    %v1718 = vpop.f32.mrb[0].mxu0
    %v1719 = vadd.f32 %v1446, %v1718
    %1720 = vmatprep.mubr.bf16.mxu0 %v1613
    %1721 = vmatmul.mubr.bf16.gmra.mrb[0].mxu0 %v1612
    %v1722 = vpop.f32.mrb[0].mxu0
    %v1723 = vadd.f32 %v1451, %v1722
    %v1724 = vpop.f32.mrb[0].mxu0
    %v1725 = vadd.f32 %v1451, %v1724
    %v1726 = vpop.f32.mrb[0].mxu0
    %v1727 = vadd.f32 %v1456, %v1726
    %v1728 = vpop.f32.mrb[0].mxu0
    %v1729 = vadd.f32 %v1456, %v1728
    %1730 = vmatprep.mubr.bf16.mxu0 %v1617
    %1731 = vmatmul.mubr.bf16.gmra.mrb[0].mxu0 %v1616
    %v1732 = vpop.f32.mrb[0].mxu0
    %v1733 = vadd.f32 %v1461, %v1732
    %v1734 = vpop.f32.mrb[0].mxu0
    %v1735 = vadd.f32 %v1461, %v1734
    %v1736 = vpop.f32.mrb[0].mxu0
    %v1737 = vadd.f32 %v1466, %v1736
    %v1738 = vpop.f32.mrb[0].mxu0
    %v1739 = vadd.f32 %v1466, %v1738
    %1740 = vmatprep.mubr.bf16.mxu0 %v1621
    %1741 = vmatmul.mubr.bf16.gmra.mrb[0].mxu0 %v1620
    %v1742 = vpop.f32.mrb[0].mxu0
    %v1743 = vadd.f32 %v1471, %v1742
    %v1744 = vpop.f32.mrb[0].mxu0
    %v1745 = vadd.f32 %v1471, %v1744
    %v1746 = vpop.f32.mrb[0].mxu0
    %v1747 = vadd.f32 %v1476, %v1746
    %v1748 = vpop.f32.mrb[0].mxu0
    %v1749 = vadd.f32 %v1476, %v1748
    %1750 = vmatprep.mubr.bf16.mxu0 %v1625
    %1751 = vmatmul.mubr.bf16.gmra.mrb[0].mxu0 %v1624
    %v1752 = vpop.f32.mrb[0].mxu0
    %v1753 = vadd.f32 %v1481, %v1752
    %v1754 = vpop.f32.mrb[0].mxu0
    %v1755 = vadd.f32 %v1481, %v1754
    %v1756 = vpop.f32.mrb[0].mxu0
    %v1757 = vadd.f32 %v1486, %v1756
    %v1758 = vpop.f32.mrb[0].mxu0
    %v1759 = vadd.f32 %v1486, %v1758
    %1760 = vmatprep.mubr.bf16.mxu0 %v1629
    %1761 = vmatmul.mubr.bf16.gmra.mrb[0].mxu0 %v1628
    %v1762 = vpop.f32.mrb[0].mxu0
    %v1763 = vadd.f32 %v1491, %v1762
    %v1764 = vpop.f32.mrb[0].mxu0
    %v1765 = vadd.f32 %v1491, %v1764
    %v1766 = vpop.f32.mrb[0].mxu0
    %v1767 = vadd.f32 %v1496, %v1766
    %v1768 = vpop.f32.mrb[0].mxu0
    %v1769 = vadd.f32 %v1496, %v1768
    %1770 = vmatprep.mubr.bf16.mxu0 %v1633
    %1771 = vmatmul.mubr.bf16.gmra.mrb[0].mxu0 %v1632
    %v1772 = vpop.f32.mrb[0].mxu0
    %v1773 = vadd.f32 %v1501, %v1772
    %v1774 = vpop.f32.mrb[0].mxu0
    %v1775 = vadd.f32 %v1501, %v1774
    %v1776 = vpop.f32.mrb[0].mxu0
    %v1777 = vadd.f32 %v1506, %v1776
    %v1778 = vpop.f32.mrb[0].mxu0
    %v1779 = vadd.f32 %v1506, %v1778
    %1780 = vdwg.mxu0
    %1781 = vmatprep.subr.bf16.mxu0 %v1349
    %1782 = vmatpush1.bf16.msra.mxu0 %v1348
    %1783 = vmatprep.subr.bf16.mxu0 %v1351
    %1784 = vmatpush1.bf16.msra.mxu0 %v1350
    %1785 = vmatprep.subr.bf16.mxu0 %v1353
    %1786 = vmatpush1.bf16.msra.mxu0 %v1352
    %1787 = vmatprep.subr.bf16.mxu0 %v1355
    %1788 = vmatpush1.bf16.msra.mxu0 %v1354
    %1789 = vmatprep.subr.bf16.mxu0 %v1357
    %1790 = vmatpush1.bf16.msra.mxu0 %v1356
    %1791 = vmatprep.subr.bf16.mxu0 %v1359
    %1792 = vmatpush1.bf16.msra.mxu0 %v1358
    %1793 = vmatprep.subr.bf16.mxu0 %v1361
    %1794 = vmatpush1.bf16.msra.mxu0 %v1360
    %1795 = vmatprep.subr.bf16.mxu0 %v1363
    %1796 = vmatpush1.bf16.msra.mxu0 %v1362
    %1797 = vmatprep.subr.bf16.mxu0 %v1365
    %1798 = vmatpush1.bf16.msra.mxu0 %v1364
    %1799 = vmatprep.subr.bf16.mxu0 %v1367
    %1800 = vmatpush1.bf16.msra.mxu0 %v1366
    %1801 = vmatprep.subr.bf16.mxu0 %v1369
    %1802 = vmatpush1.bf16.msra.mxu0 %v1368
    %1803 = vmatprep.subr.bf16.mxu0 %v1371
    %1804 = vmatpush1.bf16.msra.mxu0 %v1370
    %1805 = vmatprep.subr.bf16.mxu0 %v1373
    %1806 = vmatpush1.bf16.msra.mxu0 %v1372
    %1807 = vmatprep.subr.bf16.mxu0 %v1375
    %1808 = vmatpush1.bf16.msra.mxu0 %v1374
    %1809 = vmatprep.subr.bf16.mxu0 %v1377
    %1810 = vmatpush1.bf16.msra.mxu0 %v1376
    %1811 = vmatprep.subr.bf16.mxu0 %v1379
    %1812 = vmatpush1.bf16.msra.mxu0 %v1378
    %1813 = vmatprep.mubr.bf16.mxu0 %v1607
    %1814 = vmatmul.mubr.bf16.gmra.mrb[0].mxu0 %v1606
    %v1815 = vpop.f32.mrb[0].mxu0
    %v1816 = vadd.f32 %v1703, %v1815
    %v1817 = vpop.f32.mrb[0].mxu0
    %v1818 = vadd.f32 %v1705, %v1817
    %v1819 = vpop.f32.mrb[0].mxu0
    %v1820 = vadd.f32 %v1707, %v1819
    %v1821 = vpop.f32.mrb[0].mxu0
    %v1822 = vadd.f32 %v1709, %v1821
    %1823 = vmatprep.mubr.bf16.mxu0 %v1611
    %1824 = vmatmul.mubr.bf16.gmra.mrb[0].mxu0 %v1610
    %v1825 = vpop.f32.mrb[0].mxu0
    %v1826 = vadd.f32 %v1713, %v1825
    %v1827 = vpop.f32.mrb[0].mxu0
    %v1828 = vadd.f32 %v1715, %v1827
    %v1829 = vpop.f32.mrb[0].mxu0
    %v1830 = vadd.f32 %v1717, %v1829
    %v1831 = vpop.f32.mrb[0].mxu0
    %v1832 = vadd.f32 %v1719, %v1831
    %1833 = vmatprep.mubr.bf16.mxu0 %v1615
    %1834 = vmatmul.mubr.bf16.gmra.mrb[0].mxu0 %v1614
    %v1835 = vpop.f32.mrb[0].mxu0
    %v1836 = vadd.f32 %v1723, %v1835
    %v1837 = vpop.f32.mrb[0].mxu0
    %v1838 = vadd.f32 %v1725, %v1837
    %v1839 = vpop.f32.mrb[0].mxu0
    %v1840 = vadd.f32 %v1727, %v1839
    %v1841 = vpop.f32.mrb[0].mxu0
    %v1842 = vadd.f32 %v1729, %v1841
    %1843 = vmatprep.mubr.bf16.mxu0 %v1619
    %1844 = vmatmul.mubr.bf16.gmra.mrb[0].mxu0 %v1618
    %v1845 = vpop.f32.mrb[0].mxu0
    %v1846 = vadd.f32 %v1733, %v1845
    %v1847 = vpop.f32.mrb[0].mxu0
    %v1848 = vadd.f32 %v1735, %v1847
    %v1849 = vpop.f32.mrb[0].mxu0
    %v1850 = vadd.f32 %v1737, %v1849
    %v1851 = vpop.f32.mrb[0].mxu0
    %v1852 = vadd.f32 %v1739, %v1851
    %1853 = vmatprep.mubr.bf16.mxu0 %v1623
    %1854 = vmatmul.mubr.bf16.gmra.mrb[0].mxu0 %v1622
    %v1855 = vpop.f32.mrb[0].mxu0
    %v1856 = vadd.f32 %v1743, %v1855
    %v1857 = vpop.f32.mrb[0].mxu0
    %v1858 = vadd.f32 %v1745, %v1857
    %v1859 = vpop.f32.mrb[0].mxu0
    %v1860 = vadd.f32 %v1747, %v1859
    %v1861 = vpop.f32.mrb[0].mxu0
    %v1862 = vadd.f32 %v1749, %v1861
    %1863 = vmatprep.mubr.bf16.mxu0 %v1627
    %1864 = vmatmul.mubr.bf16.gmra.mrb[0].mxu0 %v1626
    %v1865 = vpop.f32.mrb[0].mxu0
    %v1866 = vadd.f32 %v1753, %v1865
    %v1867 = vpop.f32.mrb[0].mxu0
    %v1868 = vadd.f32 %v1755, %v1867
    %v1869 = vpop.f32.mrb[0].mxu0
    %v1870 = vadd.f32 %v1757, %v1869
    %v1871 = vpop.f32.mrb[0].mxu0
    %v1872 = vadd.f32 %v1759, %v1871
    %1873 = vmatprep.mubr.bf16.mxu0 %v1631
    %1874 = vmatmul.mubr.bf16.gmra.mrb[0].mxu0 %v1630
    %v1875 = vpop.f32.mrb[0].mxu0
    %v1876 = vadd.f32 %v1763, %v1875
    %v1877 = vpop.f32.mrb[0].mxu0
    %v1878 = vadd.f32 %v1765, %v1877
    %v1879 = vpop.f32.mrb[0].mxu0
    %v1880 = vadd.f32 %v1767, %v1879
    %v1881 = vpop.f32.mrb[0].mxu0
    %v1882 = vadd.f32 %v1769, %v1881
    %1883 = vmatprep.mubr.bf16.mxu0 %v1635
    %1884 = vmatmul.mubr.bf16.gmra.mrb[0].mxu0 %v1634
    %v1885 = vpop.f32.mrb[0].mxu0
    %v1886 = vadd.f32 %v1773, %v1885
    %v1887 = vpop.f32.mrb[0].mxu0
    %v1888 = vadd.f32 %v1775, %v1887
    %v1889 = vpop.f32.mrb[0].mxu0
    %v1890 = vadd.f32 %v1777, %v1889
    %v1891 = vpop.f32.mrb[0].mxu0
    %v1892 = vadd.f32 %v1779, %v1891
    %1893 = vdwg.mxu0
    %v1894 = vmax.f32 %v1816, 0.0
    %v1895 = vmax.f32 %v1818, 0.0
    %v1896 = vmax.f32 %v1820, 0.0
    %v1897 = vmax.f32 %v1822, 0.0
    %v1898 = vmax.f32 %v1826, 0.0
    %v1899 = vmax.f32 %v1828, 0.0
    %v1900 = vmax.f32 %v1830, 0.0
    %v1901 = vmax.f32 %v1832, 0.0
    %v1902 = vmax.f32 %v1836, 0.0
    %v1903 = vmax.f32 %v1838, 0.0
    %v1904 = vmax.f32 %v1840, 0.0
    %v1905 = vmax.f32 %v1842, 0.0
    %v1906 = vmax.f32 %v1846, 0.0
    %v1907 = vmax.f32 %v1848, 0.0
    %v1908 = vmax.f32 %v1850, 0.0
    %v1909 = vmax.f32 %v1852, 0.0
    %v1910 = vmax.f32 %v1856, 0.0
    %v1911 = vmax.f32 %v1858, 0.0
    %v1912 = vmax.f32 %v1860, 0.0
    %v1913 = vmax.f32 %v1862, 0.0
    %v1914 = vmax.f32 %v1866, 0.0
    %v1915 = vmax.f32 %v1868, 0.0
    %v1916 = vmax.f32 %v1870, 0.0
    %v1917 = vmax.f32 %v1872, 0.0
    %v1918 = vmax.f32 %v1876, 0.0
    %v1919 = vmax.f32 %v1878, 0.0
    %v1920 = vmax.f32 %v1880, 0.0
    %v1921 = vmax.f32 %v1882, 0.0
    %v1922 = vmax.f32 %v1886, 0.0
    %v1923 = vmax.f32 %v1888, 0.0
    %v1924 = vmax.f32 %v1890, 0.0
    %v1925 = vmax.f32 %v1892, 0.0
    %v1926 = vpack.c.bf16 %v1896, %v1894
    %v1927 = vpack.c.bf16 %v1897, %v1895
    %v1928 = vpack.c.bf16 %v1900, %v1898
    %v1929 = vpack.c.bf16 %v1901, %v1899
    %v1930 = vpack.c.bf16 %v1904, %v1902
    %v1931 = vpack.c.bf16 %v1905, %v1903
    %v1932 = vpack.c.bf16 %v1908, %v1906
    %v1933 = vpack.c.bf16 %v1909, %v1907
    %v1934 = vpack.c.bf16 %v1912, %v1910
    %v1935 = vpack.c.bf16 %v1913, %v1911
    %v1936 = vpack.c.bf16 %v1916, %v1914
    %v1937 = vpack.c.bf16 %v1917, %v1915
    %v1938 = vpack.c.bf16 %v1920, %v1918
    %v1939 = vpack.c.bf16 %v1921, %v1919
    %v1940 = vpack.c.bf16 %v1924, %v1922
    %v1941 = vpack.c.bf16 %v1925, %v1923
    %v1942 = vld [vmem:[%s5] sm:$0xf]
    %v1943 = vld [vmem:[%s5 + $0x4] sm:$0xf]
    %v1944 = vld [vmem:[%s5 + $0x8] sm:$0xf]
    %v1945 = vld [vmem:[%s5 + $0xc] sm:$0xf]
    %v1946 = vld [vmem:[%s5 + $0x10] sm:$0xf]
    %v1947 = vld [vmem:[%s5 + $0x14] sm:$0xf]
    %v1948 = vld [vmem:[%s5 + $0x18] sm:$0xf]
    %v1949 = vld [vmem:[%s5 + $0x1c] sm:$0xf]
    %v1950 = vld [vmem:[%s5 + $0x20] sm:$0xf]
    %v1951 = vld [vmem:[%s5 + $0x24] sm:$0xf]
    %v1952 = vld [vmem:[%s5 + $0x28] sm:$0xf]
    %v1953 = vld [vmem:[%s5 + $0x2c] sm:$0xf]
    %v1954 = vld [vmem:[%s5 + $0x30] sm:$0xf]
    %v1955 = vld [vmem:[%s5 + $0x34] sm:$0xf]
    %v1956 = vld [vmem:[%s5 + $0x38] sm:$0xf]
    %v1957 = vld [vmem:[%s5 + $0x3c] sm:$0xf]
    %v1958 = vld [vmem:[%s6] sm:$0xff]
    %v1959 = vld [vmem:[%s6 + $0x8] sm:$0xff]
    %v1960 = vld [vmem:[%s6 + $0x10] sm:$0xff]
    %v1961 = vld [vmem:[%s6 + $0x18] sm:$0xff]
    %v1962 = vld [vmem:[%s6 + $0x20] sm:$0xff]
    %v1963 = vld [vmem:[%s6 + $0x28] sm:$0xff]
    %v1964 = vld [vmem:[%s6 + $0x30] sm:$0xff]
    %v1965 = vld [vmem:[%s6 + $0x38] sm:$0xff]
    %v1966 = vld [vmem:[%s6 + $0x40] sm:$0xff]
    %v1967 = vld [vmem:[%s6 + $0x48] sm:$0xff]
    %v1968 = vld [vmem:[%s6 + $0x50] sm:$0xff]
    %v1969 = vld [vmem:[%s6 + $0x58] sm:$0xff]
    %v1970 = vld [vmem:[%s6 + $0x60] sm:$0xff]
    %v1971 = vld [vmem:[%s6 + $0x68] sm:$0xff]
    %v1972 = vld [vmem:[%s6 + $0x70] sm:$0xff]
    %v1973 = vld [vmem:[%s6 + $0x78] sm:$0xff]
    %1975 = vset.pattern.permute.xlu0 0
    %1976 = vperm.xlu0 %1975, %v1958
    %v1977 = vpop.permute.xlu0 %1976
    %1980 = vset.pattern.permute.xlu0 0
    %1981 = vperm.xlu0 %1980, %v1959
    %v1982 = vpop.permute.xlu0 %1981
    %1985 = vset.pattern.permute.xlu0 0
    %1986 = vperm.xlu0 %1985, %v1960
    %v1987 = vpop.permute.xlu0 %1986
    %1990 = vset.pattern.permute.xlu0 0
    %1991 = vperm.xlu0 %1990, %v1961
    %v1992 = vpop.permute.xlu0 %1991
    %1995 = vset.pattern.permute.xlu0 0
    %1996 = vperm.xlu0 %1995, %v1962
    %v1997 = vpop.permute.xlu0 %1996
    %2000 = vset.pattern.permute.xlu0 0
    %2001 = vperm.xlu0 %2000, %v1963
    %v2002 = vpop.permute.xlu0 %2001
    %2005 = vset.pattern.permute.xlu0 0
    %2006 = vperm.xlu0 %2005, %v1964
    %v2007 = vpop.permute.xlu0 %2006
    %2010 = vset.pattern.permute.xlu0 0
    %2011 = vperm.xlu0 %2010, %v1965
    %v2012 = vpop.permute.xlu0 %2011
    %2015 = vset.pattern.permute.xlu0 0
    %2016 = vperm.xlu0 %2015, %v1966
    %v2017 = vpop.permute.xlu0 %2016
    %2020 = vset.pattern.permute.xlu0 0
    %2021 = vperm.xlu0 %2020, %v1967
    %v2022 = vpop.permute.xlu0 %2021
    %2025 = vset.pattern.permute.xlu0 0
    %2026 = vperm.xlu0 %2025, %v1968
    %v2027 = vpop.permute.xlu0 %2026
    %2030 = vset.pattern.permute.xlu0 0
    %2031 = vperm.xlu0 %2030, %v1969
    %v2032 = vpop.permute.xlu0 %2031
    %2035 = vset.pattern.permute.xlu0 0
    %2036 = vperm.xlu0 %2035, %v1970
    %v2037 = vpop.permute.xlu0 %2036
    %2040 = vset.pattern.permute.xlu0 0
    %2041 = vperm.xlu0 %2040, %v1971
    %v2042 = vpop.permute.xlu0 %2041
    %2045 = vset.pattern.permute.xlu0 0
    %2046 = vperm.xlu0 %2045, %v1972
    %v2047 = vpop.permute.xlu0 %2046
    %2050 = vset.pattern.permute.xlu0 0
    %2051 = vperm.xlu0 %2050, %v1973
    %v2052 = vpop.permute.xlu0 %2051
    %v2070 = vunpack.c.l.b16 %v1942
    %v2071 = vunpack.c.l.b16 %v1943
    %v2072 = vunpack.c.l.b16 %v1944
    %v2073 = vunpack.c.l.b16 %v1945
    %v2074 = vunpack.c.l.b16 %v1946
    %v2075 = vunpack.c.l.b16 %v1947
    %v2076 = vunpack.c.l.b16 %v1948
    %v2077 = vunpack.c.l.b16 %v1949
    %v2078 = vunpack.c.l.b16 %v1950
    %v2079 = vunpack.c.l.b16 %v1951
    %v2080 = vunpack.c.l.b16 %v1952
    %v2081 = vunpack.c.l.b16 %v1953
    %v2082 = vunpack.c.l.b16 %v1954
    %v2083 = vunpack.c.l.b16 %v1955
    %v2084 = vunpack.c.l.b16 %v1956
    %v2085 = vunpack.c.l.b16 %v1957
    %v2086 = vpack.c.b16 %v2071, %v2070
    %v2087 = vpack.c.b16 %v2073, %v2072
    %v2088 = vpack.c.b16 %v2075, %v2074
    %v2089 = vpack.c.b16 %v2077, %v2076
    %v2090 = vpack.c.b16 %v2079, %v2078
    %v2091 = vpack.c.b16 %v2081, %v2080
    %v2092 = vpack.c.b16 %v2083, %v2082
    %v2093 = vpack.c.b16 %v2085, %v2084
    %2102 = vmatprep.subr.bf16.mxu0 %v1927
    %2103 = vmatpush1.bf16.msra.mxu0 %v1926
    %2104 = vmatprep.subr.bf16.mxu0 %v1929
    %2105 = vmatpush1.bf16.msra.mxu0 %v1928
    %2106 = vmatprep.subr.bf16.mxu0 %v1931
    %2107 = vmatpush1.bf16.msra.mxu0 %v1930
    %2108 = vmatprep.subr.bf16.mxu0 %v1933
    %2109 = vmatpush1.bf16.msra.mxu0 %v1932
    %2110 = vmatprep.subr.bf16.mxu0 %v1935
    %2111 = vmatpush1.bf16.msra.mxu0 %v1934
    %2112 = vmatprep.subr.bf16.mxu0 %v1937
    %2113 = vmatpush1.bf16.msra.mxu0 %v1936
    %2114 = vmatprep.subr.bf16.mxu0 %v1939
    %2115 = vmatpush1.bf16.msra.mxu0 %v1938
    %2116 = vmatprep.subr.bf16.mxu0 %v1941
    %2117 = vmatpush1.bf16.msra.mxu0 %v1940
    %2118 = vmatprep.subr.bf16.mxu0 0
    %2119 = vmatpush1.bf16.msra.mxu0 0
    %2120 = vmatprep.subr.bf16.mxu0 0
    %2121 = vmatpush1.bf16.msra.mxu0 0
    %2122 = vmatprep.subr.bf16.mxu0 0
    %2123 = vmatpush1.bf16.msra.mxu0 0
    %2124 = vmatprep.subr.bf16.mxu0 0
    %2125 = vmatpush1.bf16.msra.mxu0 0
    %2126 = vmatprep.subr.bf16.mxu0 0
    %2127 = vmatpush1.bf16.msra.mxu0 0
    %2128 = vmatprep.subr.bf16.mxu0 0
    %2129 = vmatpush1.bf16.msra.mxu0 0
    %2130 = vmatprep.subr.bf16.mxu0 0
    %2131 = vmatpush1.bf16.msra.mxu0 0
    %2132 = vmatprep.subr.bf16.mxu0 0
    %2133 = vmatpush1.bf16.msra.mxu0 0
    %2134 = vmatprep.mubr.bf16.mxu0 0
    %2135 = vmatmul.mubr.bf16.gmra.mrb[0].mxu0 %v2086
    %v2136 = vpop.f32.mrb[0].mxu0
    %v2137 = vadd.f32 %v1977, %v2136
    %v2138 = vpop.f32.mrb[0].mxu0
    %v2139 = vadd.f32 %v1977, %v2138
    %v2140 = vpop.f32.mrb[0].mxu0
    %v2141 = vadd.f32 %v1982, %v2140
    %v2142 = vpop.f32.mrb[0].mxu0
    %v2143 = vadd.f32 %v1982, %v2142
    %2144 = vmatprep.mubr.bf16.mxu0 0
    %2145 = vmatmul.mubr.bf16.gmra.mrb[0].mxu0 %v2087
    %v2146 = vpop.f32.mrb[0].mxu0
    %v2147 = vadd.f32 %v1987, %v2146
    %v2148 = vpop.f32.mrb[0].mxu0
    %v2149 = vadd.f32 %v1987, %v2148
    %v2150 = vpop.f32.mrb[0].mxu0
    %v2151 = vadd.f32 %v1992, %v2150
    %v2152 = vpop.f32.mrb[0].mxu0
    %v2153 = vadd.f32 %v1992, %v2152
    %2154 = vmatprep.mubr.bf16.mxu0 0
    %2155 = vmatmul.mubr.bf16.gmra.mrb[0].mxu0 %v2088
    %v2156 = vpop.f32.mrb[0].mxu0
    %v2157 = vadd.f32 %v1997, %v2156
    %v2158 = vpop.f32.mrb[0].mxu0
    %v2159 = vadd.f32 %v1997, %v2158
    %v2160 = vpop.f32.mrb[0].mxu0
    %v2161 = vadd.f32 %v2002, %v2160
    %v2162 = vpop.f32.mrb[0].mxu0
    %v2163 = vadd.f32 %v2002, %v2162
    %2164 = vmatprep.mubr.bf16.mxu0 0
    %2165 = vmatmul.mubr.bf16.gmra.mrb[0].mxu0 %v2089
    %v2166 = vpop.f32.mrb[0].mxu0
    %v2167 = vadd.f32 %v2007, %v2166
    %v2168 = vpop.f32.mrb[0].mxu0
    %v2169 = vadd.f32 %v2007, %v2168
    %v2170 = vpop.f32.mrb[0].mxu0
    %v2171 = vadd.f32 %v2012, %v2170
    %v2172 = vpop.f32.mrb[0].mxu0
    %v2173 = vadd.f32 %v2012, %v2172
    %2174 = vmatprep.mubr.bf16.mxu0 0
    %2175 = vmatmul.mubr.bf16.gmra.mrb[0].mxu0 %v2090
    %v2176 = vpop.f32.mrb[0].mxu0
    %v2177 = vadd.f32 %v2017, %v2176
    %v2178 = vpop.f32.mrb[0].mxu0
    %v2179 = vadd.f32 %v2017, %v2178
    %v2180 = vpop.f32.mrb[0].mxu0
    %v2181 = vadd.f32 %v2022, %v2180
    %v2182 = vpop.f32.mrb[0].mxu0
    %v2183 = vadd.f32 %v2022, %v2182
    %2184 = vmatprep.mubr.bf16.mxu0 0
    %2185 = vmatmul.mubr.bf16.gmra.mrb[0].mxu0 %v2091
    %v2186 = vpop.f32.mrb[0].mxu0
    %v2187 = vadd.f32 %v2027, %v2186
    %v2188 = vpop.f32.mrb[0].mxu0
    %v2189 = vadd.f32 %v2027, %v2188
    %v2190 = vpop.f32.mrb[0].mxu0
    %v2191 = vadd.f32 %v2032, %v2190
    %v2192 = vpop.f32.mrb[0].mxu0
    %v2193 = vadd.f32 %v2032, %v2192
    %2194 = vmatprep.mubr.bf16.mxu0 0
    %2195 = vmatmul.mubr.bf16.gmra.mrb[0].mxu0 %v2092
    %v2196 = vpop.f32.mrb[0].mxu0
    %v2197 = vadd.f32 %v2037, %v2196
    %v2198 = vpop.f32.mrb[0].mxu0
    %v2199 = vadd.f32 %v2037, %v2198
    %v2200 = vpop.f32.mrb[0].mxu0
    %v2201 = vadd.f32 %v2042, %v2200
    %v2202 = vpop.f32.mrb[0].mxu0
    %v2203 = vadd.f32 %v2042, %v2202
    %2204 = vmatprep.mubr.bf16.mxu0 0
    %2205 = vmatmul.mubr.bf16.gmra.mrb[0].mxu0 %v2093
    %v2206 = vpop.f32.mrb[0].mxu0
    %v2207 = vadd.f32 %v2047, %v2206
    %v2208 = vpop.f32.mrb[0].mxu0
    %v2209 = vadd.f32 %v2047, %v2208
    %v2210 = vpop.f32.mrb[0].mxu0
    %v2211 = vadd.f32 %v2052, %v2210
    %v2212 = vpop.f32.mrb[0].mxu0
    %v2213 = vadd.f32 %v2052, %v2212
    %2214 = vdwg.mxu0
    %v2215 = vmax.f32 %v2137, 0.0
    %v2216 = vmax.f32 %v2139, 0.0
    %v2217 = vmax.f32 %v2141, 0.0
    %v2218 = vmax.f32 %v2143, 0.0
    %v2219 = vmax.f32 %v2147, 0.0
    %v2220 = vmax.f32 %v2149, 0.0
    %v2221 = vmax.f32 %v2151, 0.0
    %v2222 = vmax.f32 %v2153, 0.0
    %v2223 = vmax.f32 %v2157, 0.0
    %v2224 = vmax.f32 %v2159, 0.0
    %v2225 = vmax.f32 %v2161, 0.0
    %v2226 = vmax.f32 %v2163, 0.0
    %v2227 = vmax.f32 %v2167, 0.0
    %v2228 = vmax.f32 %v2169, 0.0
    %v2229 = vmax.f32 %v2171, 0.0
    %v2230 = vmax.f32 %v2173, 0.0
    %v2231 = vmax.f32 %v2177, 0.0
    %v2232 = vmax.f32 %v2179, 0.0
    %v2233 = vmax.f32 %v2181, 0.0
    %v2234 = vmax.f32 %v2183, 0.0
    %v2235 = vmax.f32 %v2187, 0.0
    %v2236 = vmax.f32 %v2189, 0.0
    %v2237 = vmax.f32 %v2191, 0.0
    %v2238 = vmax.f32 %v2193, 0.0
    %v2239 = vmax.f32 %v2197, 0.0
    %v2240 = vmax.f32 %v2199, 0.0
    %v2241 = vmax.f32 %v2201, 0.0
    %v2242 = vmax.f32 %v2203, 0.0
    %v2243 = vmax.f32 %v2207, 0.0
    %v2244 = vmax.f32 %v2209, 0.0
    %v2245 = vmax.f32 %v2211, 0.0
    %v2246 = vmax.f32 %v2213, 0.0
    %v2247 = vpack.c.bf16 %v2217, %v2215
    %v2248 = vpack.c.bf16 %v2218, %v2216
    %v2249 = vpack.c.bf16 %v2221, %v2219
    %v2250 = vpack.c.bf16 %v2222, %v2220
    %v2251 = vpack.c.bf16 %v2225, %v2223
    %v2252 = vpack.c.bf16 %v2226, %v2224
    %v2253 = vpack.c.bf16 %v2229, %v2227
    %v2254 = vpack.c.bf16 %v2230, %v2228
    %v2255 = vpack.c.bf16 %v2233, %v2231
    %v2256 = vpack.c.bf16 %v2234, %v2232
    %v2257 = vpack.c.bf16 %v2237, %v2235
    %v2258 = vpack.c.bf16 %v2238, %v2236
    %v2259 = vpack.c.bf16 %v2241, %v2239
    %v2260 = vpack.c.bf16 %v2242, %v2240
    %v2261 = vpack.c.bf16 %v2245, %v2243
    %v2262 = vpack.c.bf16 %v2246, %v2244
    %v2263 = vld [vmem:[%s7] sm:$0xf]
    %v2264 = vld [vmem:[%s8] sm:$0xff]
    %2266 = vset.pattern.permute.xlu0 0
    %2267 = vperm.xlu0 %2266, %v2264
    %v2268 = vpop.permute.xlu0 %2267
    %2270 = vmatprep.subr.bf16.mxu0 %v2248
    %2271 = vmatpush1.bf16.msra.mxu0 %v2247
    %2272 = vmatprep.subr.bf16.mxu0 %v2250
    %2273 = vmatpush1.bf16.msra.mxu0 %v2249
    %2274 = vmatprep.subr.bf16.mxu0 %v2252
    %2275 = vmatpush1.bf16.msra.mxu0 %v2251
    %2276 = vmatprep.subr.bf16.mxu0 %v2254
    %2277 = vmatpush1.bf16.msra.mxu0 %v2253
    %2278 = vmatprep.subr.bf16.mxu0 %v2256
    %2279 = vmatpush1.bf16.msra.mxu0 %v2255
    %2280 = vmatprep.subr.bf16.mxu0 %v2258
    %2281 = vmatpush1.bf16.msra.mxu0 %v2257
    %2282 = vmatprep.subr.bf16.mxu0 %v2260
    %2283 = vmatpush1.bf16.msra.mxu0 %v2259
    %2284 = vmatprep.subr.bf16.mxu0 %v2262
    %2285 = vmatpush1.bf16.msra.mxu0 %v2261
    %2286 = vmatprep.subr.bf16.mxu0 0
    %2287 = vmatpush1.bf16.msra.mxu0 0
    %2288 = vmatprep.subr.bf16.mxu0 0
    %2289 = vmatpush1.bf16.msra.mxu0 0
    %2290 = vmatprep.subr.bf16.mxu0 0
    %2291 = vmatpush1.bf16.msra.mxu0 0
    %2292 = vmatprep.subr.bf16.mxu0 0
    %2293 = vmatpush1.bf16.msra.mxu0 0
    %2294 = vmatprep.subr.bf16.mxu0 0
    %2295 = vmatpush1.bf16.msra.mxu0 0
    %2296 = vmatprep.subr.bf16.mxu0 0
    %2297 = vmatpush1.bf16.msra.mxu0 0
    %2298 = vmatprep.subr.bf16.mxu0 0
    %2299 = vmatpush1.bf16.msra.mxu0 0
    %2300 = vmatprep.subr.bf16.mxu0 0
    %2301 = vmatpush1.bf16.msra.mxu0 0
    %2302 = vmatprep.mubr.bf16.mxu0 0
    %2303 = vmatmul.mubr.bf16.gmra.mrb[0].mxu0 %v2263
    %v2304 = vpop.f32.mrb[0].mxu0
    %v2305 = vadd.f32 %v2268, %v2304
    %v2306 = vpop.f32.mrb[0].mxu0
    %v2307 = vadd.f32 %v2268, %v2306
    %v2308 = vpop.f32.mrb[0].mxu0
    %v2309 = vpop.f32.mrb[0].mxu0
    %2310 = vdwg.mxu0
    %v2311 = vsub.f32 0.0, %v2305
    %v2312 = vsub.f32 0.0, %v2307
    %v2313 = vmul.f32 %v2311, 1.442695
    %v2314 = vpow.pop %v2313
    %v2315 = vmul.f32 %v2312, 1.442695
    %v2316 = vpow.pop %v2315
    %v2317 = vadd.f32 %v2314, 1.0
    %v2318 = vadd.f32 %v2316, 1.0
    %v2319 = vrcp.pop %v2317
    %v2320 = vrcp.pop %v2318
    %v2323 = vcombine.low %v2319, %v2320
    %v2325 = vunpack.c.l.s4 1966171168
    %v2326 = vunpack.c.0.s8 %v2325
    %v2327 = vlaneseq
    %v2328 = vshrl.u32 %v2327, 7
    %v2329 = vsub.s32 %v2326, %v2328
    %v2330 = vrot.slane %v2323, %v2329
    %v2332 = vunpack.c.l.s4 1966171168
    %v2333 = vunpack.c.0.s8 %v2332
    %v2334 = vlaneseq
    %v2335 = vshrl.u32 %v2334, 7
    %v2336 = vsub.s32 %v2333, %v2335
    %v2337 = vrot.slane %v2330, %v2336
    %v2339 = vlaneseq
    %vm2340 = vcmp.ge.s32.totalorder %v2339, 0
    %vm2341 = vcmp.lt.s32.totalorder %v2339, 256
    %vm2342 = vmand %vm2340, %vm2341
    %2343 = vst.msk [vmem:[#allocation2] sm:$0x3] %vm2342, %v2337
    // Predicated region
    $region38: #{tpu_custom_call.1} parent=1 // pred_check
      _
    $region39: #{tpu_custom_call.1} parent=1 // pred_check_branch
      %2345 = sbr.rel (0) target = $region41
    $region40: #{tpu_custom_call.1} parent=1 // pred_region
      %s2347 = ssub.s32 32, 32
      %2348 = vsyncadd [#allocation3], %s2347
      %s2350 = sshll.u32 [#allocation2], 4
      %s2351 = int_to_ptr.vmem [resolvable:$true] %s2350
      %2353 = dma.vmem_to_hbm [thread:$0]  %s2351, 32, %s9, [#allocation3]
    $region41: #{tpu_custom_call.1} parent=1 // pred_fallthru
      _
    // Predicated region
    $region42: #{tpu_custom_call.1} parent=1 // pred_check
      _
    $region43: #{tpu_custom_call.1} parent=1 // pred_check_branch
      %2355 = sbr.rel (0) target = $region45
    $region44: #{tpu_custom_call.1} parent=1 // pred_region
      %2356 = dma.done [#allocation3], 32
    $region45: #{tpu_custom_call.1} parent=1 // pred_fallthru
      _
    %2357 = vsyncpa [#allocation3], 1

</llo_original>
